<compile_context>
chip_gen: v7x
topology: tpu7x:2x2x1
jax: 0.10.0
libtpu: 0.0.40
codegen_flags: <defaults>
</compile_context>

<pallas_src>
import functools

import jax
import jax.numpy as jnp
from jax import lax
from jax.experimental import pallas as pl
from jax.experimental.pallas import tpu as pltpu


_UNROLL_MAX_LAYERS = 8   # Python-unroll the layer loop up to this depth.


# --------------------------------------------------------------------------
# Pallas kernel: full flow chain (L coupling layers) for one batch tile.
# --------------------------------------------------------------------------
def _seqflow_kernel(*refs, num_layers, d_half, reverse, has_context):
    if has_context:
        (xa_ref, xb_ref, lp_ref, ctx_ref,
         w1_ref, b1_ref, wst_ref, bst_ref,
         ya_ref, yb_ref, lpo_ref) = refs
    else:
        (xa_ref, xb_ref, lp_ref,
         w1_ref, b1_ref, wst_ref, bst_ref,
         ya_ref, yb_ref, lpo_ref) = refs
        ctx_ref = None

    w_dtype = w1_ref.dtype                       # bf16 weights keep the MXU fast path
    xa = xa_ref[...].astype(jnp.float32)
    xb = xb_ref[...].astype(jnp.float32)
    lp = lp_ref[...].astype(jnp.float32)
    ctx = ctx_ref[...].astype(w_dtype) if has_context else None

    def layer(i, carry):
        xa, xb, lp = carry
        if reverse:
            xa, xb = xb, xa                       # undo the forward half-swap
            li = num_layers - 1 - i
        else:
            li = i

        # Fused conditioner: [xa, ctx] @ [w1a ; w1c]  (single MXU push, K=dh+C).
        xin = xa.astype(w_dtype)
        if has_context:
            xin = jnp.concatenate([xin, ctx], axis=-1)
        h = jnp.tanh(jnp.dot(xin, w1_ref[li],
                             preferred_element_type=jnp.float32)
                     + b1_ref[li])

        # Fused s/t head: one (H, 2*dh) matmul, split afterwards.
        st = (jnp.dot(h.astype(w_dtype), wst_ref[li],
                      preferred_element_type=jnp.float32)
              + bst_ref[li])
        s = jnp.tanh(st[:, :d_half])
        t = st[:, d_half:]

        if not reverse:
            xb_new = xb * jnp.exp(s) + t
            lp_new = lp - jnp.sum(s, axis=-1, keepdims=True)
            return xb_new, xa, lp_new             # half swap via carry ordering
        else:
            xb_new = (xb - t) * jnp.exp(-s)
            lp_new = lp + jnp.sum(s, axis=-1, keepdims=True)
            return xa, xb_new, lp_new

    carry = (xa, xb, lp)
    if num_layers <= _UNROLL_MAX_LAYERS:
        for j in range(num_layers):               # static weight indices
            carry = layer(j, carry)
    else:
        # Deep chains: keep vreg pressure / compile time bounded; stacked
        # weight refs are indexed with the dynamic loop index.
        carry = lax.fori_loop(0, num_layers, layer, carry)
    xa, xb, lp = carry

    ya_ref[...] = xa.astype(ya_ref.dtype)
    yb_ref[...] = xb.astype(yb_ref.dtype)
    lpo_ref[...] = lp.astype(lpo_ref.dtype)


# --------------------------------------------------------------------------
# Python wrapper (the SequentialFlow "module").
# --------------------------------------------------------------------------
class SequentialFlowPallas:
    """Chain of `num_layers` context-conditioned affine coupling layers.

    Mirrors SequentialFlow.forward(x, logpx, context, reverse): threads
    (x, logpx) through the chain in forward or reverse order.
    """
    # TODO(synk): the PyTorch container also accepts an arbitrary `inds`
    # subset/ordering and times the loop with time.time(); only the standard
    # forward/reverse orderings are implemented here.

    def __init__(self, dim, context_dim, hidden, num_layers, key,
                 param_dtype=jnp.float32):
        assert dim % 2 == 0
        self.dim = dim
        self.context_dim = context_dim
        self.hidden = hidden
        self.num_layers = num_layers
        self.param_dtype = param_dtype
        dh = dim // 2
        ks = jax.random.split(key, 4)
        scale = 0.1
        # Pre-fused weights:
        #   w1  = [w1a ; w1c] stacked along K      -> (L, dh+C, H)
        #   wst = [ws  , wt ] concatenated along N -> (L, H, 2*dh)
        # Biases stored as (L, 1, N) so dynamic layer indexing stays on an
        # untiled leading axis; biases stay f32 (added post-accumulation).
        self.params = dict(
            w1=(scale * jax.random.normal(
                ks[0], (num_layers, dh + context_dim, hidden))).astype(param_dtype),
            b1=(scale * jax.random.normal(
                ks[1], (num_layers, 1, hidden))).astype(jnp.float32),
            wst=(scale * jax.random.normal(
                ks[2], (num_layers, hidden, 2 * dh))).astype(param_dtype),
            bst=(scale * jax.random.normal(
                ks[3], (num_layers, 1, 2 * dh))).astype(jnp.float32),
        )

    @staticmethod
    def _pick_batch_tile(B, cap=256):
        # Largest multiple-of-8 divisor of B that is <= cap; prefer >= 2 grid
        # steps so both v7x TensorCores get work.  Fall back to the whole
        # batch as a single block (valid even when B is not 8-aligned).
        cands = [t for t in range(8, min(B, cap) + 1, 8) if B % t == 0]
        if not cands:
            return B
        tb = max(cands)
        if B // tb < 2:
            two_step = [t for t in cands if B // t >= 2]
            if two_step:
                tb = max(two_step)
        return tb

    def __call__(self, x, logpx=None, context=None, reverse=False):
        B, D = x.shape
        assert D == self.dim
        dh = D // 2
        L, H, C = self.num_layers, self.hidden, self.context_dim
        p = self.params

        if logpx is None:
            logpx = jnp.zeros((B, 1), jnp.float32)
        logpx = logpx.reshape(B, 1).astype(jnp.float32)
        has_context = context is not None

        # Lane-dense halves; the mid-lane split lives outside the kernel.
        xa = x[:, :dh]
        xb = x[:, dh:]

        TB = self._pick_batch_tile(B)
        grid = (B // TB,)

        kernel = functools.partial(
            _seqflow_kernel, num_layers=L, d_half=dh,
            reverse=bool(reverse), has_context=has_context)

        row = lambda shape: pl.BlockSpec(shape, lambda i: (i, 0))
        # Weight blocks are grid-invariant (constant index map) so they are
        # only DMA'd once across the whole batch grid.
        full3 = lambda shape: pl.BlockSpec(shape, lambda i: (0, 0, 0))

        in_arrays = [xa, xb, logpx]
        in_specs = [row((TB, dh)), row((TB, dh)), row((TB, 1))]
        if has_context:
            in_arrays.append(context)
            in_specs.append(row((TB, C)))
            w1 = p["w1"]
        else:
            # Unconditioned path: drop the context rows of the fused weight
            # entirely — no zero-context matmul, no (TB, C) DMA.
            w1 = p["w1"][:, :dh, :]
        in_arrays += [w1, p["b1"], p["wst"], p["bst"]]
        in_specs += [full3(w1.shape), full3(p["b1"].shape),
                     full3(p["wst"].shape), full3(p["bst"].shape)]

        # TODO(synk): for very large L / feature dims the all-layers-resident
        # weight layout should be replaced by per-layer streaming
        # (layer grid axis or pltpu.emit_pipeline) to stay inside v7x's
        # 64 MiB VMEM; the shapes here fit comfortably.
        weight_bytes = sum(int(a.size) * a.dtype.itemsize
                           for a in (w1, p["b1"], p["wst"], p["bst"]))
        act_bytes = TB * (2 * dh + (C if has_context else 0) + 2) * 4
        est = 2 * weight_bytes + 4 * act_bytes + (1 << 20)
        cp_kwargs = dict(dimension_semantics=("parallel",))
        if est > 32 * 2 ** 20:
            cp_kwargs["vmem_limit_bytes"] = min(est, 64 * 2 ** 20)

        ya, yb, lp_out = pl.pallas_call(
            kernel,
            out_shape=(jax.ShapeDtypeStruct((B, dh), x.dtype),
                       jax.ShapeDtypeStruct((B, dh), x.dtype),
                       jax.ShapeDtypeStruct((B, 1), jnp.float32)),
            grid=grid,
            in_specs=in_specs,
            out_specs=(row((TB, dh)), row((TB, dh)), row((TB, 1))),
            compiler_params=pltpu.CompilerParams(**cp_kwargs),
        )(*in_arrays)

        return jnp.concatenate([ya, yb], axis=-1), lp_out


# --------------------------------------------------------------------------
# Pure-JAX reference (mirrors what the PyTorch chain would compute).
# --------------------------------------------------------------------------
def _reference(params, x, logpx, ctx, num_layers, reverse=False):
    dh = x.shape[-1] // 2
    w1 = params["w1"].astype(jnp.float32)
    b1 = params["b1"].astype(jnp.float32)
    wst = params["wst"].astype(jnp.float32)
    bst = params["bst"].astype(jnp.float32)
    if ctx is None:
        w1 = w1[:, :dh, :]
    xa, xb = x[:, :dh], x[:, dh:]
    lp = logpx
    order = range(num_layers - 1, -1, -1) if reverse else range(num_layers)
    for i in order:
        if reverse:
            xa, xb = xb, xa
        xin = xa if ctx is None else jnp.concatenate([xa, ctx], axis=-1)
        h = jnp.tanh(xin @ w1[i] + b1[i])
        st = h @ wst[i] + bst[i]
        s = jnp.tanh(st[:, :dh])
        t = st[:, dh:]
        if not reverse:
            xb = xb * jnp.exp(s) + t
            lp = lp - jnp.sum(s, axis=-1, keepdims=True)
            xa, xb = xb, xa
        else:
            xb = (xb - t) * jnp.exp(-s)
            lp = lp + jnp.sum(s, axis=-1, keepdims=True)
    return jnp.concatenate([xa, xb], axis=-1), lp


if __name__ == "__main__":
    B, D, C, H = 16, 32, 16, 32
    key = jax.random.PRNGKey(0)
    k_flow, k_flow2, k_x, k_ctx = jax.random.split(key, 4)

    x = jax.random.normal(k_x, (B, D), jnp.float32)
    ctx = jax.random.normal(k_ctx, (B, C), jnp.float32)
    logpx = jnp.zeros((B, 1), jnp.float32)

    # --- small chain: unrolled layer loop ---------------------------------
    L = 4
    flow = SequentialFlowPallas(dim=D, context_dim=C, hidden=H,
                                num_layers=L, key=k_flow)
    z, logpz = flow(x, logpx=logpx, context=ctx, reverse=False)
    z = jax.block_until_ready(z)
    logpz = jax.block_until_ready(logpz)
    z_ref, logpz_ref = _reference(flow.params, x, logpx, ctx, L, reverse=False)
    assert jnp.allclose(z, z_ref, atol=1e-4, rtol=1e-4)
    assert jnp.allclose(logpz, logpz_ref, atol=1e-4, rtol=1e-4)

    # invertibility (reverse pass through the same chain)
    x_rec, logpx_rec = flow(z, logpx=logpz, context=ctx, reverse=True)
    x_rec = jax.block_until_ready(x_rec)
    assert jnp.allclose(x_rec, x, atol=1e-3, rtol=1e-3)
    assert jnp.allclose(logpx_rec, logpx, atol=1e-3, rtol=1e-3)

    # --- context=None path: dedicated variant without the ctx matmul ------
    z0, logpz0 = flow(x, logpx=logpx, context=None, reverse=False)
    z0 = jax.block_until_ready(z0)
    z0_ref, logpz0_ref = _reference(flow.params, x, logpx, None, L, reverse=False)
    assert jnp.allclose(z0, z0_ref, atol=1e-4, rtol=1e-4)
    assert jnp.allclose(logpz0, logpz0_ref, atol=1e-4, rtol=1e-4)

    # --- deep chain: fori_loop over layers, dynamic weight indexing --------
    L2 = 12
    flow2 = SequentialFlowPallas(dim=D, context_dim=C, hidden=H,
                                 num_layers=L2, key=k_flow2)
    z2, logpz2 = flow2(x, logpx=logpx, context=ctx, reverse=False)
    z2 = jax.block_until_ready(z2)
    z2_ref, logpz2_ref = _reference(flow2.params, x, logpx, ctx, L2,
                                    reverse=False)
    assert jnp.allclose(z2, z2_ref, atol=1e-4, rtol=1e-4)
    assert jnp.allclose(logpz2, logpz2_ref, atol=1e-4, rtol=1e-4)
    x2_rec, _ = flow2(z2, logpx=logpz2, context=ctx, reverse=True)
    x2_rec = jax.block_until_ready(x2_rec)
    assert jnp.allclose(x2_rec, x, atol=1e-3, rtol=1e-3)

    print("KERNEL_OK")
</pallas_src>

<mosaic_0001>
module attributes {stable_mosaic.version = 11 : i64} {
  func.func @_seqflow_kernel(%arg0: i32, %arg1: memref<8x16xf32, #tpu.memory_space<vmem>>, %arg2: memref<8x16xf32, #tpu.memory_space<vmem>>, %arg3: memref<8x1xf32, #tpu.memory_space<vmem>>, %arg4: memref<8x16xf32, #tpu.memory_space<vmem>>, %arg5: memref<4x32x32xf32, #tpu.memory_space<vmem>>, %arg6: memref<4x1x32xf32, #tpu.memory_space<vmem>>, %arg7: memref<4x32x32xf32, #tpu.memory_space<vmem>>, %arg8: memref<4x1x32xf32, #tpu.memory_space<vmem>>, %arg9: memref<8x16xf32, #tpu.memory_space<vmem>>, %arg10: memref<8x16xf32, #tpu.memory_space<vmem>>, %arg11: memref<8x1xf32, #tpu.memory_space<vmem>>) attributes {dimension_semantics = [#tpu.dimension_semantics<parallel>], iteration_bounds = array<i64: 2>, scalar_prefetch = 0 : i64, scratch_operands = 0 : i64, tpu.core_type = #tpu.core_type<tc>, window_params = [{transform_indices = @transform_0, window_bounds = array<i64: 8, 16>}, {transform_indices = @transform_1, window_bounds = array<i64: 8, 16>}, {transform_indices = @transform_2, window_bounds = array<i64: 8, 1>}, {transform_indices = @transform_3, window_bounds = array<i64: 8, 16>}, {pipeline_mode = #tpu.pipeline_mode<synchronous>, transform_indices = @transform_4, window_bounds = array<i64: 4, 32, 32>}, {pipeline_mode = #tpu.pipeline_mode<synchronous>, transform_indices = @transform_5, window_bounds = array<i64: 4, 1, 32>}, {pipeline_mode = #tpu.pipeline_mode<synchronous>, transform_indices = @transform_6, window_bounds = array<i64: 4, 32, 32>}, {pipeline_mode = #tpu.pipeline_mode<synchronous>, transform_indices = @transform_7, window_bounds = array<i64: 4, 1, 32>}, {transform_indices = @transform_8, window_bounds = array<i64: 8, 16>}, {transform_indices = @transform_9, window_bounds = array<i64: 8, 16>}, {transform_indices = @transform_10, window_bounds = array<i64: 8, 1>}]} {
    %c0 = arith.constant 0 : index
    %c0_0 = arith.constant 0 : index
    %0 = vector.load %arg1[%c0, %c0_0] : memref<8x16xf32, #tpu.memory_space<vmem>>, vector<8x16xf32>
    %c0_1 = arith.constant 0 : index
    %c0_2 = arith.constant 0 : index
    %1 = vector.load %arg2[%c0_1, %c0_2] : memref<8x16xf32, #tpu.memory_space<vmem>>, vector<8x16xf32>
    %c0_3 = arith.constant 0 : index
    %c0_4 = arith.constant 0 : index
    %2 = vector.load %arg3[%c0_3, %c0_4] : memref<8x1xf32, #tpu.memory_space<vmem>>, vector<8x1xf32>
    %c0_5 = arith.constant 0 : index
    %c0_6 = arith.constant 0 : index
    %3 = vector.load %arg4[%c0_5, %c0_6] : memref<8x16xf32, #tpu.memory_space<vmem>>, vector<8x16xf32>
    %4 = tpu.concatenate %0, %3 in 1 : vector<8x16xf32>, vector<8x16xf32> -> vector<8x32xf32>
    %c0_7 = arith.constant 0 : index
    %c0_8 = arith.constant 0 : index
    %c0_9 = arith.constant 0 : index
    %5 = vector.load %arg5[%c0_7, %c0_8, %c0_9] : memref<4x32x32xf32, #tpu.memory_space<vmem>>, vector<1x32x32xf32>
    %6 = vector.shape_cast %5 : vector<1x32x32xf32> to vector<32x32xf32>
    %cst = arith.constant dense<0.000000e+00> : vector<8x32xf32>
    %7 = tpu.matmul %4, %6, %cst {dimension_numbers = #tpu.dot_dimension_numbers<[1], [0], [0], [1], [0, 0, 1, 1], [], []>} : vector<8x32xf32>, vector<32x32xf32>, vector<8x32xf32> -> vector<8x32xf32>
    %c0_10 = arith.constant 0 : index
    %c0_11 = arith.constant 0 : index
    %c0_12 = arith.constant 0 : index
    %8 = vector.load %arg6[%c0_10, %c0_11, %c0_12] : memref<4x1x32xf32, #tpu.memory_space<vmem>>, vector<1x1x32xf32>
    %9 = vector.shape_cast %8 : vector<1x1x32xf32> to vector<1x32xf32>
    %10 = vector.broadcast %9 : vector<1x32xf32> to vector<8x32xf32>
    %11 = arith.addf %7, %10 : vector<8x32xf32>
    %12 = math.tanh %11 : vector<8x32xf32>
    %c0_13 = arith.constant 0 : index
    %c0_14 = arith.constant 0 : index
    %c0_15 = arith.constant 0 : index
    %13 = vector.load %arg7[%c0_13, %c0_14, %c0_15] : memref<4x32x32xf32, #tpu.memory_space<vmem>>, vector<1x32x32xf32>
    %14 = vector.shape_cast %13 : vector<1x32x32xf32> to vector<32x32xf32>
    %cst_16 = arith.constant dense<0.000000e+00> : vector<8x32xf32>
    %15 = tpu.matmul %12, %14, %cst_16 {dimension_numbers = #tpu.dot_dimension_numbers<[1], [0], [0], [1], [0, 0, 1, 1], [], []>} : vector<8x32xf32>, vector<32x32xf32>, vector<8x32xf32> -> vector<8x32xf32>
    %c0_17 = arith.constant 0 : index
    %c0_18 = arith.constant 0 : index
    %c0_19 = arith.constant 0 : index
    %16 = vector.load %arg8[%c0_17, %c0_18, %c0_19] : memref<4x1x32xf32, #tpu.memory_space<vmem>>, vector<1x1x32xf32>
    %17 = vector.shape_cast %16 : vector<1x1x32xf32> to vector<1x32xf32>
    %18 = vector.broadcast %17 : vector<1x32xf32> to vector<8x32xf32>
    %19 = arith.addf %15, %18 : vector<8x32xf32>
    %20 = vector.extract_strided_slice %19 {offsets = [0, 0], sizes = [8, 16], strides = [1, 1]} : vector<8x32xf32> to vector<8x16xf32>
    %21 = math.tanh %20 : vector<8x16xf32>
    %22 = vector.extract_strided_slice %19 {offsets = [0, 16], sizes = [8, 16], strides = [1, 1]} : vector<8x32xf32> to vector<8x16xf32>
    %23 = math.exp %21 : vector<8x16xf32>
    %24 = arith.mulf %1, %23 : vector<8x16xf32>
    %25 = arith.addf %24, %22 : vector<8x16xf32>
    %cst_20 = arith.constant dense<0.000000e+00> : vector<8xf32>
    %26 = vector.multi_reduction <add>, %21, %cst_20 [1] : vector<8x16xf32> to vector<8xf32>
    %27 = vector.shape_cast %26 : vector<8xf32> to vector<8x1xf32>
    %28 = arith.subf %2, %27 : vector<8x1xf32>
    %29 = tpu.concatenate %25, %3 in 1 : vector<8x16xf32>, vector<8x16xf32> -> vector<8x32xf32>
    %c1 = arith.constant 1 : index
    %c0_21 = arith.constant 0 : index
    %c0_22 = arith.constant 0 : index
    %30 = vector.load %arg5[%c1, %c0_21, %c0_22] : memref<4x32x32xf32, #tpu.memory_space<vmem>>, vector<1x32x32xf32>
    %31 = vector.shape_cast %30 : vector<1x32x32xf32> to vector<32x32xf32>
    %cst_23 = arith.constant dense<0.000000e+00> : vector<8x32xf32>
    %32 = tpu.matmul %29, %31, %cst_23 {dimension_numbers = #tpu.dot_dimension_numbers<[1], [0], [0], [1], [0, 0, 1, 1], [], []>} : vector<8x32xf32>, vector<32x32xf32>, vector<8x32xf32> -> vector<8x32xf32>
    %c1_24 = arith.constant 1 : index
    %c0_25 = arith.constant 0 : index
    %c0_26 = arith.constant 0 : index
    %33 = vector.load %arg6[%c1_24, %c0_25, %c0_26] : memref<4x1x32xf32, #tpu.memory_space<vmem>>, vector<1x1x32xf32>
    %34 = vector.shape_cast %33 : vector<1x1x32xf32> to vector<1x32xf32>
    %35 = vector.broadcast %34 : vector<1x32xf32> to vector<8x32xf32>
    %36 = arith.addf %32, %35 : vector<8x32xf32>
    %37 = math.tanh %36 : vector<8x32xf32>
    %c1_27 = arith.constant 1 : index
    %c0_28 = arith.constant 0 : index
    %c0_29 = arith.constant 0 : index
    %38 = vector.load %arg7[%c1_27, %c0_28, %c0_29] : memref<4x32x32xf32, #tpu.memory_space<vmem>>, vector<1x32x32xf32>
    %39 = vector.shape_cast %38 : vector<1x32x32xf32> to vector<32x32xf32>
    %cst_30 = arith.constant dense<0.000000e+00> : vector<8x32xf32>
    %40 = tpu.matmul %37, %39, %cst_30 {dimension_numbers = #tpu.dot_dimension_numbers<[1], [0], [0], [1], [0, 0, 1, 1], [], []>} : vector<8x32xf32>, vector<32x32xf32>, vector<8x32xf32> -> vector<8x32xf32>
    %c1_31 = arith.constant 1 : index
    %c0_32 = arith.constant 0 : index
    %c0_33 = arith.constant 0 : index
    %41 = vector.load %arg8[%c1_31, %c0_32, %c0_33] : memref<4x1x32xf32, #tpu.memory_space<vmem>>, vector<1x1x32xf32>
    %42 = vector.shape_cast %41 : vector<1x1x32xf32> to vector<1x32xf32>
    %43 = vector.broadcast %42 : vector<1x32xf32> to vector<8x32xf32>
    %44 = arith.addf %40, %43 : vector<8x32xf32>
    %45 = vector.extract_strided_slice %44 {offsets = [0, 0], sizes = [8, 16], strides = [1, 1]} : vector<8x32xf32> to vector<8x16xf32>
    %46 = math.tanh %45 : vector<8x16xf32>
    %47 = vector.extract_strided_slice %44 {offsets = [0, 16], sizes = [8, 16], strides = [1, 1]} : vector<8x32xf32> to vector<8x16xf32>
    %48 = math.exp %46 : vector<8x16xf32>
    %49 = arith.mulf %0, %48 : vector<8x16xf32>
    %50 = arith.addf %49, %47 : vector<8x16xf32>
    %cst_34 = arith.constant dense<0.000000e+00> : vector<8xf32>
    %51 = vector.multi_reduction <add>, %46, %cst_34 [1] : vector<8x16xf32> to vector<8xf32>
    %52 = vector.shape_cast %51 : vector<8xf32> to vector<8x1xf32>
    %53 = arith.subf %28, %52 : vector<8x1xf32>
    %54 = tpu.concatenate %50, %3 in 1 : vector<8x16xf32>, vector<8x16xf32> -> vector<8x32xf32>
    %c2 = arith.constant 2 : index
    %c0_35 = arith.constant 0 : index
    %c0_36 = arith.constant 0 : index
    %55 = vector.load %arg5[%c2, %c0_35, %c0_36] : memref<4x32x32xf32, #tpu.memory_space<vmem>>, vector<1x32x32xf32>
    %56 = vector.shape_cast %55 : vector<1x32x32xf32> to vector<32x32xf32>
    %cst_37 = arith.constant dense<0.000000e+00> : vector<8x32xf32>
    %57 = tpu.matmul %54, %56, %cst_37 {dimension_numbers = #tpu.dot_dimension_numbers<[1], [0], [0], [1], [0, 0, 1, 1], [], []>} : vector<8x32xf32>, vector<32x32xf32>, vector<8x32xf32> -> vector<8x32xf32>
    %c2_38 = arith.constant 2 : index
    %c0_39 = arith.constant 0 : index
    %c0_40 = arith.constant 0 : index
    %58 = vector.load %arg6[%c2_38, %c0_39, %c0_40] : memref<4x1x32xf32, #tpu.memory_space<vmem>>, vector<1x1x32xf32>
    %59 = vector.shape_cast %58 : vector<1x1x32xf32> to vector<1x32xf32>
    %60 = vector.broadcast %59 : vector<1x32xf32> to vector<8x32xf32>
    %61 = arith.addf %57, %60 : vector<8x32xf32>
    %62 = math.tanh %61 : vector<8x32xf32>
    %c2_41 = arith.constant 2 : index
    %c0_42 = arith.constant 0 : index
    %c0_43 = arith.constant 0 : index
    %63 = vector.load %arg7[%c2_41, %c0_42, %c0_43] : memref<4x32x32xf32, #tpu.memory_space<vmem>>, vector<1x32x32xf32>
    %64 = vector.shape_cast %63 : vector<1x32x32xf32> to vector<32x32xf32>
    %cst_44 = arith.constant dense<0.000000e+00> : vector<8x32xf32>
    %65 = tpu.matmul %62, %64, %cst_44 {dimension_numbers = #tpu.dot_dimension_numbers<[1], [0], [0], [1], [0, 0, 1, 1], [], []>} : vector<8x32xf32>, vector<32x32xf32>, vector<8x32xf32> -> vector<8x32xf32>
    %c2_45 = arith.constant 2 : index
    %c0_46 = arith.constant 0 : index
    %c0_47 = arith.constant 0 : index
    %66 = vector.load %arg8[%c2_45, %c0_46, %c0_47] : memref<4x1x32xf32, #tpu.memory_space<vmem>>, vector<1x1x32xf32>
    %67 = vector.shape_cast %66 : vector<1x1x32xf32> to vector<1x32xf32>
    %68 = vector.broadcast %67 : vector<1x32xf32> to vector<8x32xf32>
    %69 = arith.addf %65, %68 : vector<8x32xf32>
    %70 = vector.extract_strided_slice %69 {offsets = [0, 0], sizes = [8, 16], strides = [1, 1]} : vector<8x32xf32> to vector<8x16xf32>
    %71 = math.tanh %70 : vector<8x16xf32>
    %72 = vector.extract_strided_slice %69 {offsets = [0, 16], sizes = [8, 16], strides = [1, 1]} : vector<8x32xf32> to vector<8x16xf32>
    %73 = math.exp %71 : vector<8x16xf32>
    %74 = arith.mulf %25, %73 : vector<8x16xf32>
    %75 = arith.addf %74, %72 : vector<8x16xf32>
    %cst_48 = arith.constant dense<0.000000e+00> : vector<8xf32>
    %76 = vector.multi_reduction <add>, %71, %cst_48 [1] : vector<8x16xf32> to vector<8xf32>
    %77 = vector.shape_cast %76 : vector<8xf32> to vector<8x1xf32>
    %78 = arith.subf %53, %77 : vector<8x1xf32>
    %79 = tpu.concatenate %75, %3 in 1 : vector<8x16xf32>, vector<8x16xf32> -> vector<8x32xf32>
    %c3 = arith.constant 3 : index
    %c0_49 = arith.constant 0 : index
    %c0_50 = arith.constant 0 : index
    %80 = vector.load %arg5[%c3, %c0_49, %c0_50] : memref<4x32x32xf32, #tpu.memory_space<vmem>>, vector<1x32x32xf32>
    %81 = vector.shape_cast %80 : vector<1x32x32xf32> to vector<32x32xf32>
    %cst_51 = arith.constant dense<0.000000e+00> : vector<8x32xf32>
    %82 = tpu.matmul %79, %81, %cst_51 {dimension_numbers = #tpu.dot_dimension_numbers<[1], [0], [0], [1], [0, 0, 1, 1], [], []>} : vector<8x32xf32>, vector<32x32xf32>, vector<8x32xf32> -> vector<8x32xf32>
    %c3_52 = arith.constant 3 : index
    %c0_53 = arith.constant 0 : index
    %c0_54 = arith.constant 0 : index
    %83 = vector.load %arg6[%c3_52, %c0_53, %c0_54] : memref<4x1x32xf32, #tpu.memory_space<vmem>>, vector<1x1x32xf32>
    %84 = vector.shape_cast %83 : vector<1x1x32xf32> to vector<1x32xf32>
    %85 = vector.broadcast %84 : vector<1x32xf32> to vector<8x32xf32>
    %86 = arith.addf %82, %85 : vector<8x32xf32>
    %87 = math.tanh %86 : vector<8x32xf32>
    %c3_55 = arith.constant 3 : index
    %c0_56 = arith.constant 0 : index
    %c0_57 = arith.constant 0 : index
    %88 = vector.load %arg7[%c3_55, %c0_56, %c0_57] : memref<4x32x32xf32, #tpu.memory_space<vmem>>, vector<1x32x32xf32>
    %89 = vector.shape_cast %88 : vector<1x32x32xf32> to vector<32x32xf32>
    %cst_58 = arith.constant dense<0.000000e+00> : vector<8x32xf32>
    %90 = tpu.matmul %87, %89, %cst_58 {dimension_numbers = #tpu.dot_dimension_numbers<[1], [0], [0], [1], [0, 0, 1, 1], [], []>} : vector<8x32xf32>, vector<32x32xf32>, vector<8x32xf32> -> vector<8x32xf32>
    %c3_59 = arith.constant 3 : index
    %c0_60 = arith.constant 0 : index
    %c0_61 = arith.constant 0 : index
    %91 = vector.load %arg8[%c3_59, %c0_60, %c0_61] : memref<4x1x32xf32, #tpu.memory_space<vmem>>, vector<1x1x32xf32>
    %92 = vector.shape_cast %91 : vector<1x1x32xf32> to vector<1x32xf32>
    %93 = vector.broadcast %92 : vector<1x32xf32> to vector<8x32xf32>
    %94 = arith.addf %90, %93 : vector<8x32xf32>
    %95 = vector.extract_strided_slice %94 {offsets = [0, 0], sizes = [8, 16], strides = [1, 1]} : vector<8x32xf32> to vector<8x16xf32>
    %96 = math.tanh %95 : vector<8x16xf32>
    %97 = vector.extract_strided_slice %94 {offsets = [0, 16], sizes = [8, 16], strides = [1, 1]} : vector<8x32xf32> to vector<8x16xf32>
    %98 = math.exp %96 : vector<8x16xf32>
    %99 = arith.mulf %50, %98 : vector<8x16xf32>
    %100 = arith.addf %99, %97 : vector<8x16xf32>
    %cst_62 = arith.constant dense<0.000000e+00> : vector<8xf32>
    %101 = vector.multi_reduction <add>, %96, %cst_62 [1] : vector<8x16xf32> to vector<8xf32>
    %102 = vector.shape_cast %101 : vector<8xf32> to vector<8x1xf32>
    %103 = arith.subf %78, %102 : vector<8x1xf32>
    %c0_63 = arith.constant 0 : index
    %c0_64 = arith.constant 0 : index
    %104 = vector.load %arg9[%c0_63, %c0_64] : memref<8x16xf32, #tpu.memory_space<vmem>>, vector<8x16xf32>
    tpu.vector_store %arg9[%c0_63, %c0_64], %100 {strides = array<i32>} : memref<8x16xf32, #tpu.memory_space<vmem>>, vector<8x16xf32>,
    %c0_65 = arith.constant 0 : index
    %c0_66 = arith.constant 0 : index
    %105 = vector.load %arg10[%c0_65, %c0_66] : memref<8x16xf32, #tpu.memory_space<vmem>>, vector<8x16xf32>
    tpu.vector_store %arg10[%c0_65, %c0_66], %75 {strides = array<i32>} : memref<8x16xf32, #tpu.memory_space<vmem>>, vector<8x16xf32>,
    %c0_67 = arith.constant 0 : index
    %c0_68 = arith.constant 0 : index
    %106 = vector.load %arg11[%c0_67, %c0_68] : memref<8x1xf32, #tpu.memory_space<vmem>>, vector<8x1xf32>
    tpu.vector_store %arg11[%c0_67, %c0_68], %103 {strides = array<i32>} : memref<8x1xf32, #tpu.memory_space<vmem>>, vector<8x1xf32>,
    return
  }
  func.func @transform_0(%arg0: i32) -> (i32, i32) {
    %c0_i32 = arith.constant 0 : i32
    %c0_i32_0 = arith.constant 0 : i32
    return %arg0, %c0_i32 : i32, i32
  }
  func.func @transform_1(%arg0: i32) -> (i32, i32) {
    %c0_i32 = arith.constant 0 : i32
    %c0_i32_0 = arith.constant 0 : i32
    return %arg0, %c0_i32 : i32, i32
  }
  func.func @transform_2(%arg0: i32) -> (i32, i32) {
    %c0_i32 = arith.constant 0 : i32
    %c0_i32_0 = arith.constant 0 : i32
    return %arg0, %c0_i32 : i32, i32
  }
  func.func @transform_3(%arg0: i32) -> (i32, i32) {
    %c0_i32 = arith.constant 0 : i32
    %c0_i32_0 = arith.constant 0 : i32
    return %arg0, %c0_i32 : i32, i32
  }
  func.func @transform_4(%arg0: i32) -> (i32, i32, i32) {
    %c0_i32 = arith.constant 0 : i32
    %c0_i32_0 = arith.constant 0 : i32
    %c0_i32_1 = arith.constant 0 : i32
    %c0_i32_2 = arith.constant 0 : i32
    return %c0_i32, %c0_i32_0, %c0_i32_1 : i32, i32, i32
  }
  func.func @transform_5(%arg0: i32) -> (i32, i32, i32) {
    %c0_i32 = arith.constant 0 : i32
    %c0_i32_0 = arith.constant 0 : i32
    %c0_i32_1 = arith.constant 0 : i32
    %c0_i32_2 = arith.constant 0 : i32
    return %c0_i32, %c0_i32_0, %c0_i32_1 : i32, i32, i32
  }
  func.func @transform_6(%arg0: i32) -> (i32, i32, i32) {
    %c0_i32 = arith.constant 0 : i32
    %c0_i32_0 = arith.constant 0 : i32
    %c0_i32_1 = arith.constant 0 : i32
    %c0_i32_2 = arith.constant 0 : i32
    return %c0_i32, %c0_i32_0, %c0_i32_1 : i32, i32, i32
  }
  func.func @transform_7(%arg0: i32) -> (i32, i32, i32) {
    %c0_i32 = arith.constant 0 : i32
    %c0_i32_0 = arith.constant 0 : i32
    %c0_i32_1 = arith.constant 0 : i32
    %c0_i32_2 = arith.constant 0 : i32
    return %c0_i32, %c0_i32_0, %c0_i32_1 : i32, i32, i32
  }
  func.func @transform_8(%arg0: i32) -> (i32, i32) {
    %c0_i32 = arith.constant 0 : i32
    %c0_i32_0 = arith.constant 0 : i32
    return %arg0, %c0_i32 : i32, i32
  }
  func.func @transform_9(%arg0: i32) -> (i32, i32) {
    %c0_i32 = arith.constant 0 : i32
    %c0_i32_0 = arith.constant 0 : i32
    return %arg0, %c0_i32 : i32, i32
  }
  func.func @transform_10(%arg0: i32) -> (i32, i32) {
    %c0_i32 = arith.constant 0 : i32
    %c0_i32_0 = arith.constant 0 : i32
    return %arg0, %c0_i32 : i32, i32
  }
}

</mosaic_0001>

<llo_original>
// kernel: tpu_custom_call.1
$region0: #{tpu_custom_call.1}
  #allocation0 [shape = 'u32[]', space=smem, size = 0x4, offset = 0x4, fixed_abs, tag = 'smem constant byte address 0x4 - core index']
  #allocation1 [shape = 'u32[144,128]{1,0:T(1,128)}', space=vmem, size = 0x12000, scoped, tag = 'internal scratch']
  %s0 = inlined_call_operand.vmem [shape: f32[16,16], index: 0, kind: input, shape index: {}]
  %s1 = inlined_call_operand.hbm [shape: f32[16,16], index: 1, kind: input, shape index: {}]
  %s2 = inlined_call_operand.vmem [shape: f32[16,1], index: 2, kind: input, shape index: {}]
  %s3 = inlined_call_operand.hbm [shape: f32[16,16], index: 3, kind: input, shape index: {}]
  %s4 = inlined_call_operand.hbm [shape: f32[4,32,32], index: 4, kind: input, shape index: {}]
  %s5 = inlined_call_operand.vmem [shape: f32[4,1,32], index: 5, kind: input, shape index: {}]
  %s6 = inlined_call_operand.hbm [shape: f32[4,32,32], index: 6, kind: input, shape index: {}]
  %s7 = inlined_call_operand.vmem [shape: f32[4,1,32], index: 7, kind: input, shape index: {}]
  %s8 = inlined_call_operand.hbm [shape: f32[16,16], index: 8, kind: output, shape index: {0}]
  %s9 = inlined_call_operand.hbm [shape: f32[16,16], index: 9, kind: output, shape index: {1}]
  %s10 = inlined_call_operand.vmem [shape: f32[16,1], index: 10, kind: output, shape index: {2}]
  %11 = xla_tuple %s8, %s9, %s10
  %s12 = sld [smem:[#allocation0]]
  $region97: #{tpu_custom_call.1} parent=0
    _
  %s14 = ssub.s32 1, %s12
  %s15 = scalar_select 0, %s14, %s12
  $region1: #{tpu_custom_call.1} parent=0
    #allocation2 [shape = 'u8[8192]{0}', space=vmem, size = 0x2000, scoped, tag = 'input window, operand 1']
    #allocation3 [shape = 's32[2]{0}', space=sflag, size = 0x8, scoped, tag = 'scoped memory for tpu_custom_call.1']
    #allocation4 [shape = 's32[2]{0}', space=sflag, size = 0x8, scoped, tag = 'scoped memory for tpu_custom_call.1']
    #allocation5 [shape = 'u8[8192]{0}', space=vmem, size = 0x2000, scoped, tag = 'input window, operand 3']
    #allocation6 [shape = 's32[2]{0}', space=sflag, size = 0x8, scoped, tag = 'scoped memory for tpu_custom_call.1']
    #allocation7 [shape = 'u8[65536]{0}', space=vmem, size = 0x10000, scoped, tag = 'input window, operand 4, single buffered']
    #allocation8 [shape = 'u8[65536]{0}', space=vmem, size = 0x10000, scoped, tag = 'input window, operand 6, single buffered']
    #allocation9 [shape = 's32[1]{0}', space=sflag, size = 0x4, scoped, tag = 'scoped memory for tpu_custom_call.1']
    #allocation10 [shape = 'u8[8192]{0}', space=vmem, size = 0x2000, scoped, tag = 'output window, operand 0']
    #allocation11 [shape = 'u8[8192]{0}', space=vmem, size = 0x2000, scoped, tag = 'output window, operand 1']
    #allocation12 [shape = 's32[2]{0}', space=sflag, size = 0x8, scoped, tag = 'scoped memory for tpu_custom_call.1']
    %16 = vsyncpa [#allocation3], 0
    %s17 = scalar_lea.sflag [#allocation3], 1
    %18 = vsyncpa %s17, 0
    %19 = vsyncpa [#allocation6], 0
    %s20 = scalar_lea.sflag [#allocation6], 1
    %21 = vsyncpa %s20, 0
    %22 = vsyncpa [#allocation9], 0
    %23 = vsyncpa [#allocation4], 0
    %s24 = scalar_lea.sflag [#allocation4], 1
    %25 = vsyncpa %s24, 0
    %26 = vsyncpa [#allocation12], 0
    %s27 = scalar_lea.sflag [#allocation12], 1
    %28 = vsyncpa %s27, 0
    loop: start=0, step=1, limit=4
    $region2: #{tpu_custom_call.1} parent=1 // loop_pre_header
      _
    $region3: #{tpu_custom_call.1} parent=1 // loop_header
      %s30 = sphi 0, %s34
      %p31 = scmp.ge.s32.totalorder %s30, 4
      %s40 = sphi 0, %s42
      %s43 = sphi 0, %s40
      %s44 = sphi 0, %s43
      %s60 = sphi 0, %s44
      %s66 = sphi 0, %s68
      %s69 = sphi 0, %s66
      %s70 = sphi 0, %s69
      %s86 = sphi 0, %s70
      %s92 = sphi 0, %s94
      %s95 = sphi 0, %s92
      %s96 = sphi 0, %s95
      %s112 = sphi 0, %s96
      %s118 = sphi 0, %s120
      %s121 = sphi 0, %s118
      %s122 = sphi 0, %s121
      %s138 = sphi 0, %s122
      %s142 = sphi 0, %s142
      %s144 = sphi 0, %s142
      %s145 = sphi 0, %s144
      %s159 = sphi 0, %s145
      %s163 = sphi 0, %s163
      %s165 = sphi 0, %s163
      %s166 = sphi 0, %s165
      %s180 = sphi 0, %s166
      %s184 = sphi 0, %s184
      %s186 = sphi 0, %s184
      %s187 = sphi 0, %s186
      %s201 = sphi 0, %s187
      %s205 = sphi 0, %s205
      %s207 = sphi 0, %s205
      %s208 = sphi 0, %s207
      %s222 = sphi 0, %s208
      %s228 = sphi 0, %s230
      %s231 = sphi 0, %s228
      %s232 = sphi 0, %s231
      %s248 = sphi 0, %s232
      %s254 = sphi 0, %s256
      %s257 = sphi 0, %s254
      %s258 = sphi 0, %s257
      %s274 = sphi 0, %s258
      %s280 = sphi 0, %s282
      %s283 = sphi 0, %s280
      %s284 = sphi 0, %s283
      %s300 = sphi 0, %s284
    $region4: #{tpu_custom_call.1} parent=1 // loop_header_branch
      %33 = sbr.rel (%p31) target = $region8
    $region5: #{tpu_custom_call.1} parent=1 // loop_body
      %s35 = ssub.s32 %s30, 1
      %s36 = ssub.s32 %s30, 2
      %s37 = sadd.s32 %s30, 1
      %s38 = ssub.s32 %s30, %s37
      %p39 = scmp.eq.s32.totalorder %s38, 0
      %s41 = sadd.s32 %s40, 1
      %s42 = scalar_select %p39, %s40, %s41
      %p45 = pneg %p39
      %p46 = scmp.eq.s32.totalorder %s30, 1
      %p47 = por %p45, %p46
      %p48 = scmp.ne.s32.totalorder %s40, %s43
      %p49 = scmp.eq.s32.totalorder %s30, 0
      %p50 = por %p48, %p49
      %p51 = scmp.ne.s32.totalorder %s40, %s43
      %p52 = scmp.eq.s32.totalorder %s35, 1
      %p53 = por %p51, %p52
      %p54 = scmp.ne.s32.totalorder %s43, %s44
      %p55 = scmp.eq.s32.totalorder %s35, 0
      %p56 = por %p54, %p55
      %p57 = scmp.ne.s32.totalorder %s43, %s44
      %p58 = scmp.eq.s32.totalorder %s36, 1
      %p59 = por %p57, %p58
      %p61 = scmp.ne.s32.totalorder %s44, %s60
      %p62 = scmp.eq.s32.totalorder %s36, 0
      %p63 = por %p61, %p62
      %s64 = ssub.s32 %s30, %s37
      %p65 = scmp.eq.s32.totalorder %s64, 0
      %s67 = sadd.s32 %s66, 1
      %s68 = scalar_select %p65, %s66, %s67
      %p71 = pneg %p65
      %p72 = scmp.eq.s32.totalorder %s30, 1
      %p73 = por %p71, %p72
      %p74 = scmp.ne.s32.totalorder %s66, %s69
      %p75 = scmp.eq.s32.totalorder %s30, 0
      %p76 = por %p74, %p75
      %p77 = scmp.ne.s32.totalorder %s66, %s69
      %p78 = scmp.eq.s32.totalorder %s35, 1
      %p79 = por %p77, %p78
      %p80 = scmp.ne.s32.totalorder %s69, %s70
      %p81 = scmp.eq.s32.totalorder %s35, 0
      %p82 = por %p80, %p81
      %p83 = scmp.ne.s32.totalorder %s69, %s70
      %p84 = scmp.eq.s32.totalorder %s36, 1
      %p85 = por %p83, %p84
      %p87 = scmp.ne.s32.totalorder %s70, %s86
      %p88 = scmp.eq.s32.totalorder %s36, 0
      %p89 = por %p87, %p88
      %s90 = ssub.s32 %s30, %s37
      %p91 = scmp.eq.s32.totalorder %s90, 0
      %s93 = sadd.s32 %s92, 1
      %s94 = scalar_select %p91, %s92, %s93
      %p97 = pneg %p91
      %p98 = scmp.eq.s32.totalorder %s30, 1
      %p99 = por %p97, %p98
      %p100 = scmp.ne.s32.totalorder %s92, %s95
      %p101 = scmp.eq.s32.totalorder %s30, 0
      %p102 = por %p100, %p101
      %p103 = scmp.ne.s32.totalorder %s92, %s95
      %p104 = scmp.eq.s32.totalorder %s35, 1
      %p105 = por %p103, %p104
      %p106 = scmp.ne.s32.totalorder %s95, %s96
      %p107 = scmp.eq.s32.totalorder %s35, 0
      %p108 = por %p106, %p107
      %p109 = scmp.ne.s32.totalorder %s95, %s96
      %p110 = scmp.eq.s32.totalorder %s36, 1
      %p111 = por %p109, %p110
      %p113 = scmp.ne.s32.totalorder %s96, %s112
      %p114 = scmp.eq.s32.totalorder %s36, 0
      %p115 = por %p113, %p114
      %s116 = ssub.s32 %s30, %s37
      %p117 = scmp.eq.s32.totalorder %s116, 0
      %s119 = sadd.s32 %s118, 1
      %s120 = scalar_select %p117, %s118, %s119
      %p123 = pneg %p117
      %p124 = scmp.eq.s32.totalorder %s30, 1
      %p125 = por %p123, %p124
      %p126 = scmp.ne.s32.totalorder %s118, %s121
      %p127 = scmp.eq.s32.totalorder %s30, 0
      %p128 = por %p126, %p127
      %p129 = scmp.ne.s32.totalorder %s118, %s121
      %p130 = scmp.eq.s32.totalorder %s35, 1
      %p131 = por %p129, %p130
      %p132 = scmp.ne.s32.totalorder %s121, %s122
      %p133 = scmp.eq.s32.totalorder %s35, 0
      %p134 = por %p132, %p133
      %p135 = scmp.ne.s32.totalorder %s121, %s122
      %p136 = scmp.eq.s32.totalorder %s36, 1
      %p137 = por %p135, %p136
      %p139 = scmp.ne.s32.totalorder %s122, %s138
      %p140 = scmp.eq.s32.totalorder %s36, 0
      %p141 = por %p139, %p140
      %s143 = sadd.s32 %s142, 1
      %p146 = scmp.eq.s32.totalorder %s30, 1
      %p147 = scmp.ne.s32.totalorder %s142, %s144
      %p148 = scmp.eq.s32.totalorder %s30, 0
      %p149 = por %p147, %p148
      %p150 = scmp.ne.s32.totalorder %s142, %s144
      %p151 = scmp.eq.s32.totalorder %s35, 1
      %p152 = por %p150, %p151
      %p153 = scmp.ne.s32.totalorder %s144, %s145
      %p154 = scmp.eq.s32.totalorder %s35, 0
      %p155 = por %p153, %p154
      %p156 = scmp.ne.s32.totalorder %s144, %s145
      %p157 = scmp.eq.s32.totalorder %s36, 1
      %p158 = por %p156, %p157
      %p160 = scmp.ne.s32.totalorder %s145, %s159
      %p161 = scmp.eq.s32.totalorder %s36, 0
      %p162 = por %p160, %p161
      %s164 = sadd.s32 %s163, 1
      %p167 = scmp.eq.s32.totalorder %s30, 1
      %p168 = scmp.ne.s32.totalorder %s163, %s165
      %p169 = scmp.eq.s32.totalorder %s30, 0
      %p170 = por %p168, %p169
      %p171 = scmp.ne.s32.totalorder %s163, %s165
      %p172 = scmp.eq.s32.totalorder %s35, 1
      %p173 = por %p171, %p172
      %p174 = scmp.ne.s32.totalorder %s165, %s166
      %p175 = scmp.eq.s32.totalorder %s35, 0
      %p176 = por %p174, %p175
      %p177 = scmp.ne.s32.totalorder %s165, %s166
      %p178 = scmp.eq.s32.totalorder %s36, 1
      %p179 = por %p177, %p178
      %p181 = scmp.ne.s32.totalorder %s166, %s180
      %p182 = scmp.eq.s32.totalorder %s36, 0
      %p183 = por %p181, %p182
      %s185 = sadd.s32 %s184, 1
      %p188 = scmp.eq.s32.totalorder %s30, 1
      %p189 = scmp.ne.s32.totalorder %s184, %s186
      %p190 = scmp.eq.s32.totalorder %s30, 0
      %p191 = por %p189, %p190
      %p192 = scmp.ne.s32.totalorder %s184, %s186
      %p193 = scmp.eq.s32.totalorder %s35, 1
      %p194 = por %p192, %p193
      %p195 = scmp.ne.s32.totalorder %s186, %s187
      %p196 = scmp.eq.s32.totalorder %s35, 0
      %p197 = por %p195, %p196
      %p198 = scmp.ne.s32.totalorder %s186, %s187
      %p199 = scmp.eq.s32.totalorder %s36, 1
      %p200 = por %p198, %p199
      %p202 = scmp.ne.s32.totalorder %s187, %s201
      %p203 = scmp.eq.s32.totalorder %s36, 0
      %p204 = por %p202, %p203
      %s206 = sadd.s32 %s205, 1
      %p209 = scmp.eq.s32.totalorder %s30, 1
      %p210 = scmp.ne.s32.totalorder %s205, %s207
      %p211 = scmp.eq.s32.totalorder %s30, 0
      %p212 = por %p210, %p211
      %p213 = scmp.ne.s32.totalorder %s205, %s207
      %p214 = scmp.eq.s32.totalorder %s35, 1
      %p215 = por %p213, %p214
      %p216 = scmp.ne.s32.totalorder %s207, %s208
      %p217 = scmp.eq.s32.totalorder %s35, 0
      %p218 = por %p216, %p217
      %p219 = scmp.ne.s32.totalorder %s207, %s208
      %p220 = scmp.eq.s32.totalorder %s36, 1
      %p221 = por %p219, %p220
      %p223 = scmp.ne.s32.totalorder %s208, %s222
      %p224 = scmp.eq.s32.totalorder %s36, 0
      %p225 = por %p223, %p224
      %s226 = ssub.s32 %s30, %s37
      %p227 = scmp.eq.s32.totalorder %s226, 0
      %s229 = sadd.s32 %s228, 1
      %s230 = scalar_select %p227, %s228, %s229
      %p233 = pneg %p227
      %p234 = scmp.eq.s32.totalorder %s30, 1
      %p235 = por %p233, %p234
      %p236 = scmp.ne.s32.totalorder %s228, %s231
      %p237 = scmp.eq.s32.totalorder %s30, 0
      %p238 = por %p236, %p237
      %p239 = scmp.ne.s32.totalorder %s228, %s231
      %p240 = scmp.eq.s32.totalorder %s35, 1
      %p241 = por %p239, %p240
      %p242 = scmp.ne.s32.totalorder %s231, %s232
      %p243 = scmp.eq.s32.totalorder %s35, 0
      %p244 = por %p242, %p243
      %p245 = scmp.ne.s32.totalorder %s231, %s232
      %p246 = scmp.eq.s32.totalorder %s36, 1
      %p247 = por %p245, %p246
      %p249 = scmp.ne.s32.totalorder %s232, %s248
      %p250 = scmp.eq.s32.totalorder %s36, 0
      %p251 = por %p249, %p250
      %s252 = ssub.s32 %s30, %s37
      %p253 = scmp.eq.s32.totalorder %s252, 0
      %s255 = sadd.s32 %s254, 1
      %s256 = scalar_select %p253, %s254, %s255
      %p259 = pneg %p253
      %p260 = scmp.eq.s32.totalorder %s30, 1
      %p261 = por %p259, %p260
      %p262 = scmp.ne.s32.totalorder %s254, %s257
      %p263 = scmp.eq.s32.totalorder %s30, 0
      %p264 = por %p262, %p263
      %p265 = scmp.ne.s32.totalorder %s254, %s257
      %p266 = scmp.eq.s32.totalorder %s35, 1
      %p267 = por %p265, %p266
      %p268 = scmp.ne.s32.totalorder %s257, %s258
      %p269 = scmp.eq.s32.totalorder %s35, 0
      %p270 = por %p268, %p269
      %p271 = scmp.ne.s32.totalorder %s257, %s258
      %p272 = scmp.eq.s32.totalorder %s36, 1
      %p273 = por %p271, %p272
      %p275 = scmp.ne.s32.totalorder %s258, %s274
      %p276 = scmp.eq.s32.totalorder %s36, 0
      %p277 = por %p275, %p276
      %s278 = ssub.s32 %s30, %s37
      %p279 = scmp.eq.s32.totalorder %s278, 0
      %s281 = sadd.s32 %s280, 1
      %s282 = scalar_select %p279, %s280, %s281
      %p285 = pneg %p279
      %p286 = scmp.eq.s32.totalorder %s30, 1
      %p287 = por %p285, %p286
      %p288 = scmp.ne.s32.totalorder %s280, %s283
      %p289 = scmp.eq.s32.totalorder %s30, 0
      %p290 = por %p288, %p289
      %p291 = scmp.ne.s32.totalorder %s280, %s283
      %p292 = scmp.eq.s32.totalorder %s35, 1
      %p293 = por %p291, %p292
      %p294 = scmp.ne.s32.totalorder %s283, %s284
      %p295 = scmp.eq.s32.totalorder %s35, 0
      %p296 = por %p294, %p295
      %p297 = scmp.ne.s32.totalorder %s283, %s284
      %p298 = scmp.eq.s32.totalorder %s36, 1
      %p299 = por %p297, %p298
      %p301 = scmp.ne.s32.totalorder %s284, %s300
      %p302 = scmp.eq.s32.totalorder %s36, 0
      %p303 = por %p301, %p302
      %p304 = scmp.le.s32.totalorder 1, %s30
      %p305 = scmp.lt.s32.totalorder %s30, 3
      %p306 = pnand %p304, %p305
      %p307 = pneg %p306
      // Predicated region
      $region9: #{tpu_custom_call.1} parent=5 // pred_check
        _
      $region10: #{tpu_custom_call.1} parent=5 // pred_check_branch
        %309 = sbr.rel (%p306) target = $region12
      $region11: #{tpu_custom_call.1} parent=5 // pred_region
        %s310 = ssub.s32 %s30, 1
        // Predicated region
        $region13: #{tpu_custom_call.1} parent=11 // pred_check
          %p311 = pneg %p155
        $region14: #{tpu_custom_call.1} parent=11 // pred_check_branch
          %313 = sbr.rel (%p311) target = $region16
        $region15: #{tpu_custom_call.1} parent=11 // pred_region
          %s315 = ssub.s32 2048, 2048
          %316 = vsyncadd [#allocation6], %s315
          %s317 = sshll.u32 [#allocation7], 4
          %s318 = int_to_ptr.vmem [resolvable:$true] %s317
          %323 = dma.hbm_to_vmem [thread:$0]  %s4, 2048, %s318, [#allocation6], 128, 128, 8
        $region16: #{tpu_custom_call.1} parent=11 // pred_fallthru
          _
        // Predicated region
        $region17: #{tpu_custom_call.1} parent=11 // pred_check
          %p324 = pneg %p176
        $region18: #{tpu_custom_call.1} parent=11 // pred_check_branch
          %326 = sbr.rel (%p324) target = $region20
        $region19: #{tpu_custom_call.1} parent=11 // pred_region
          _
        $region20: #{tpu_custom_call.1} parent=11 // pred_fallthru
          _
        // Predicated region
        $region21: #{tpu_custom_call.1} parent=11 // pred_check
          %p327 = pneg %p197
        $region22: #{tpu_custom_call.1} parent=11 // pred_check_branch
          %329 = sbr.rel (%p327) target = $region24
        $region23: #{tpu_custom_call.1} parent=11 // pred_region
          %s331 = ssub.s32 2048, 2048
          %332 = vsyncadd [#allocation9], %s331
          %s333 = sshll.u32 [#allocation8], 4
          %s334 = int_to_ptr.vmem [resolvable:$true] %s333
          %339 = dma.hbm_to_vmem [thread:$0]  %s6, 2048, %s334, [#allocation9], 128, 128, 8
        $region24: #{tpu_custom_call.1} parent=11 // pred_fallthru
          _
        // Predicated region
        $region25: #{tpu_custom_call.1} parent=11 // pred_check
          %p340 = pneg %p218
        $region26: #{tpu_custom_call.1} parent=11 // pred_check_branch
          %342 = sbr.rel (%p340) target = $region28
        $region27: #{tpu_custom_call.1} parent=11 // pred_region
          _
        $region28: #{tpu_custom_call.1} parent=11 // pred_fallthru
          _
      $region12: #{tpu_custom_call.1} parent=5 // pred_fallthru
        _
      %p343 = scmp.lt.s32.totalorder %s30, 2
      // Predicated region
      $region29: #{tpu_custom_call.1} parent=5 // pred_check
        %p344 = pneg %p343
      $region30: #{tpu_custom_call.1} parent=5 // pred_check_branch
        %346 = sbr.rel (%p344) target = $region32
      $region31: #{tpu_custom_call.1} parent=5 // pred_region
        // Predicated region
        $region33: #{tpu_custom_call.1} parent=31 // pred_check
          %p347 = pneg %p50
        $region34: #{tpu_custom_call.1} parent=31 // pred_check_branch
          %349 = sbr.rel (%p347) target = $region36
        $region35: #{tpu_custom_call.1} parent=31 // pred_region
          %p350 = scmp.lt.s32.totalorder %s30, 1
          %s351 = scalar_select %p350, %s30, 1
          %s352 = smul.addr %s351, 8
          %s353 = scalar_lea.vmem %s0, %s352
        $region36: #{tpu_custom_call.1} parent=31 // pred_fallthru
          _
        // Predicated region
        $region37: #{tpu_custom_call.1} parent=31 // pred_check
          %p354 = pneg %p76
        $region38: #{tpu_custom_call.1} parent=31 // pred_check_branch
          %356 = sbr.rel (%p354) target = $region40
        $region39: #{tpu_custom_call.1} parent=31 // pred_region
          %s357 = sand.u32 %s66, 1
          %s358 = scalar_lea.sflag [#allocation3], %s357
          %s359 = sand.u32 %s66, 1
          %s360 = smul.addr %s359, 8
          %s361 = scalar_lea.vmem [#allocation2], %s360
          %s363 = ssub.s32 128, 128
          %364 = vsyncadd %s358, %s363
          %s365 = smul.addr %s30, 128
          %s366 = scalar_lea.hbm %s1, %s365
          %s368 = sshll.u32 %s361, 4
          %s369 = int_to_ptr.vmem [resolvable:$true] %s368
          %371 = dma.hbm_to_vmem [thread:$0]  %s366, 128, %s369, %s358
        $region40: #{tpu_custom_call.1} parent=31 // pred_fallthru
          _
        // Predicated region
        $region41: #{tpu_custom_call.1} parent=31 // pred_check
          %p372 = pneg %p102
        $region42: #{tpu_custom_call.1} parent=31 // pred_check_branch
          %374 = sbr.rel (%p372) target = $region44
        $region43: #{tpu_custom_call.1} parent=31 // pred_region
          %p375 = scmp.lt.s32.totalorder %s30, 1
          %s376 = scalar_select %p375, %s30, 1
          %s377 = smul.addr %s376, 8
          %s378 = scalar_lea.vmem %s2, %s377
        $region44: #{tpu_custom_call.1} parent=31 // pred_fallthru
          _
        // Predicated region
        $region45: #{tpu_custom_call.1} parent=31 // pred_check
          %p379 = pneg %p128
        $region46: #{tpu_custom_call.1} parent=31 // pred_check_branch
          %381 = sbr.rel (%p379) target = $region48
        $region47: #{tpu_custom_call.1} parent=31 // pred_region
          %s382 = sand.u32 %s30, 1
          %s383 = scalar_lea.sflag [#allocation6], %s382
          %s384 = sand.u32 %s118, 1
          %s385 = smul.addr %s384, 8
          %s386 = scalar_lea.vmem [#allocation5], %s385
          %s388 = ssub.s32 128, 128
          %389 = vsyncadd %s383, %s388
          %s390 = smul.addr %s30, 128
          %s391 = scalar_lea.hbm %s3, %s390
          %s393 = sshll.u32 %s386, 4
          %s394 = int_to_ptr.vmem [resolvable:$true] %s393
          %396 = dma.hbm_to_vmem [thread:$0]  %s391, 128, %s394, %s383
        $region48: #{tpu_custom_call.1} parent=31 // pred_fallthru
          _
      $region32: #{tpu_custom_call.1} parent=5 // pred_fallthru
        _
      %p397 = scmp.le.s32.totalorder 1, %s30
      %p398 = scmp.lt.s32.totalorder %s30, 3
      %p399 = pnand %p397, %p398
      %p400 = pneg %p399
      // Predicated region
      $region49: #{tpu_custom_call.1} parent=5 // pred_check
        _
      $region50: #{tpu_custom_call.1} parent=5 // pred_check_branch
        %402 = sbr.rel (%p399) target = $region52
      $region51: #{tpu_custom_call.1} parent=5 // pred_region
        %s403 = ssub.s32 %s30, 1
        %s404 = sand.u32 %s69, 1
        %s405 = scalar_lea.sflag [#allocation3], %s404
        %s406 = sand.u32 %s69, 1
        %s407 = smul.addr %s406, 8
        %s408 = scalar_lea.vmem [#allocation2], %s407
        // Predicated region
        $region53: #{tpu_custom_call.1} parent=51 // pred_check
          %p409 = pneg %p82
        $region54: #{tpu_custom_call.1} parent=51 // pred_check_branch
          %411 = sbr.rel (%p409) target = $region56
        $region55: #{tpu_custom_call.1} parent=51 // pred_region
          %412 = dma.done %s405, 128
        $region56: #{tpu_custom_call.1} parent=51 // pred_fallthru
          _
        %s413 = sand.u32 %s35, 1
        %s414 = scalar_lea.sflag [#allocation6], %s413
        %s415 = sand.u32 %s121, 1
        %s416 = smul.addr %s415, 8
        %s417 = scalar_lea.vmem [#allocation5], %s416
        // Predicated region
        $region57: #{tpu_custom_call.1} parent=51 // pred_check
          %p418 = pneg %p134
        $region58: #{tpu_custom_call.1} parent=51 // pred_check_branch
          %420 = sbr.rel (%p418) target = $region60
        $region59: #{tpu_custom_call.1} parent=51 // pred_region
          %421 = dma.done %s414, 128
        $region60: #{tpu_custom_call.1} parent=51 // pred_fallthru
          _
        // Predicated region
        $region61: #{tpu_custom_call.1} parent=51 // pred_check
          %p422 = pneg %p155
        $region62: #{tpu_custom_call.1} parent=51 // pred_check_branch
          %424 = sbr.rel (%p422) target = $region64
        $region63: #{tpu_custom_call.1} parent=51 // pred_region
          %425 = dma.done [#allocation6], 2048
        $region64: #{tpu_custom_call.1} parent=51 // pred_fallthru
          _
        // Predicated region
        $region65: #{tpu_custom_call.1} parent=51 // pred_check
          %p426 = pneg %p197
        $region66: #{tpu_custom_call.1} parent=51 // pred_check_branch
          %428 = sbr.rel (%p426) target = $region68
        $region67: #{tpu_custom_call.1} parent=51 // pred_region
          %429 = dma.done [#allocation9], 2048
        $region68: #{tpu_custom_call.1} parent=51 // pred_fallthru
          _
        %p430 = scmp.lt.s32.totalorder %s35, 1
        %s431 = scalar_select %p430, %s35, 1
        %s432 = smul.addr %s431, 8
        %s433 = scalar_lea.vmem %s0, %s432
        %p434 = pneg %p56
        %p435 = pneg %p53
        %s436 = sand.u32 %s69, 1
        %s437 = scalar_lea.sflag [#allocation3], %s436
        %s438 = sand.u32 %s69, 1
        %s439 = smul.addr %s438, 8
        %s440 = scalar_lea.vmem [#allocation2], %s439
        %p441 = pneg %p82
        %p442 = pneg %p79
        %p443 = scmp.lt.s32.totalorder %s35, 1
        %s444 = scalar_select %p443, %s35, 1
        %s445 = smul.addr %s444, 8
        %s446 = scalar_lea.vmem %s2, %s445
        %p447 = pneg %p108
        %p448 = pneg %p105
        %s449 = sand.u32 %s35, 1
        %s450 = scalar_lea.sflag [#allocation6], %s449
        %s451 = sand.u32 %s121, 1
        %s452 = smul.addr %s451, 8
        %s453 = scalar_lea.vmem [#allocation5], %s452
        %p454 = pneg %p134
        %p455 = pneg %p131
        %p456 = pneg %p155
        %p457 = pneg %p152
        %p458 = pneg %p176
        %p459 = pneg %p173
        %p460 = pneg %p197
        %p461 = pneg %p194
        %p462 = pneg %p218
        %p463 = pneg %p215
        %p464 = pneg %p244
        %p465 = pneg %p241
        %s466 = sand.u32 %s231, 1
        %s467 = scalar_lea.sflag [#allocation4], %s466
        %s468 = sand.u32 %s231, 1
        %s469 = smul.addr %s468, 8
        %s470 = scalar_lea.vmem [#allocation10], %s469
        %p471 = pneg %p270
        %p472 = pneg %p267
        %s473 = sand.u32 %s257, 1
        %s474 = scalar_lea.sflag [#allocation12], %s473
        %s475 = sand.u32 %s257, 1
        %s476 = smul.addr %s475, 8
        %s477 = scalar_lea.vmem [#allocation11], %s476
        %p478 = pneg %p296
        %p479 = pneg %p293
        %p480 = scmp.lt.s32.totalorder %s35, 1
        %s481 = scalar_select %p480, %s35, 1
        %s482 = smul.addr %s481, 8
        %s483 = scalar_lea.vmem %s10, %s482
        %p484 = scmp.lt.s32.totalorder %s35, 1
        %s485 = scalar_select %p484, %s35, 1
        %s486 = smul.addr %s485, 8
        %s487 = scalar_lea.vmem %s0, %s486
        %p488 = scmp.lt.s32.totalorder %s35, 1
        %s489 = scalar_select %p488, %s35, 1
        %s490 = smul.addr %s489, 8
        %s491 = scalar_lea.vmem %s2, %s490
        %p492 = scmp.lt.s32.totalorder %s35, 1
        %s493 = scalar_select %p492, %s35, 1
        %s494 = smul.addr %s493, 8
        %s495 = scalar_lea.vmem %s10, %s494
        %v496 = vld [vmem:[%s487] sm:$0xff]
        %v497 = vld [vmem:[%s408] sm:$0xff]
        %v498 = vld [vmem:[%s491] sm:$0xff]
        %v499 = vld [vmem:[%s417] sm:$0xff]
        %501 = vrot.lane.b32.xlu0 %v499, 16
        %v502 = vpop.permute.xlu0 %501
        %vm504 = vcmask 130048
        %v505 = vsel %vm504, %v496, %v502
        %v506 = vld [vmem:[#allocation7] sm:$0xff]
        %v507 = vld [vmem:[#allocation7 + $0x8] sm:$0xff]
        %v508 = vld [vmem:[#allocation7 + $0x10] sm:$0xff]
        %v509 = vld [vmem:[#allocation7 + $0x18] sm:$0xff]
        %v510 = vld [vmem:[%s5] sm:$0x1]
        %v512 = vlaneseq
        %v513 = vshrl.u32 %v512, 7
        %v514 = vsub.s32 0, %v513
        %v515 = vrot.slane %v510, %v514
        %vm517 = vcmask 261120
        %v519 = vsel %vm517, %v505, 0
        %521 = vmatprep.subr.mxu0 0.0
        %522 = vmatpush1.msra.mxu0 %v506
        %523 = vmatprep.subr.mxu0 0.0
        %524 = vmatpush1.msra.mxu0 %v507
        %525 = vmatprep.subr.mxu0 0.0
        %526 = vmatpush1.msra.mxu0 %v508
        %527 = vmatprep.subr.mxu0 0.0
        %528 = vmatpush1.msra.mxu0 %v509
        %529 = vmatprep.subr.mxu0 0.0
        %530 = vmatpush1.msra.mxu0 0.0
        %531 = vmatprep.subr.mxu0 0.0
        %532 = vmatpush1.msra.mxu0 0.0
        %533 = vmatprep.subr.mxu0 0.0
        %534 = vmatpush1.msra.mxu0 0.0
        %535 = vmatprep.subr.mxu0 0.0
        %536 = vmatpush1.msra.mxu0 0.0
        %537 = vmatprep.subr.mxu0 0.0
        %538 = vmatpush1.msra.mxu0 0.0
        %539 = vmatprep.subr.mxu0 0.0
        %540 = vmatpush1.msra.mxu0 0.0
        %541 = vmatprep.subr.mxu0 0.0
        %542 = vmatpush1.msra.mxu0 0.0
        %543 = vmatprep.subr.mxu0 0.0
        %544 = vmatpush1.msra.mxu0 0.0
        %545 = vmatprep.subr.mxu0 0.0
        %546 = vmatpush1.msra.mxu0 0.0
        %547 = vmatprep.subr.mxu0 0.0
        %548 = vmatpush1.msra.mxu0 0.0
        %549 = vmatprep.subr.mxu0 0.0
        %550 = vmatpush1.msra.mxu0 0.0
        %551 = vmatprep.subr.mxu0 0.0
        %552 = vmatpush1.msra.mxu0 0.0
        %553 = vmatprep.subr.mxu0 0.0
        %554 = vmatpush1.msra.mxu0 0.0
        %555 = vmatprep.subr.mxu0 0.0
        %556 = vmatpush1.msra.mxu0 0.0
        %557 = vmatprep.subr.mxu0 0.0
        %558 = vmatpush1.msra.mxu0 0.0
        %559 = vmatprep.subr.mxu0 0.0
        %560 = vmatpush1.msra.mxu0 0.0
        %561 = vmatprep.subr.mxu0 0.0
        %562 = vmatpush1.msra.mxu0 0.0
        %563 = vmatprep.subr.mxu0 0.0
        %564 = vmatpush1.msra.mxu0 0.0
        %565 = vmatprep.subr.mxu0 0.0
        %566 = vmatpush1.msra.mxu0 0.0
        %567 = vmatprep.subr.mxu0 0.0
        %568 = vmatpush1.msra.mxu0 0.0
        %569 = vmatprep.subr.mxu0 0.0
        %570 = vmatpush1.msra.mxu0 0.0
        %571 = vmatprep.subr.mxu0 0.0
        %572 = vmatpush1.msra.mxu0 0.0
        %573 = vmatprep.subr.mxu0 0.0
        %574 = vmatpush1.msra.mxu0 0.0
        %575 = vmatprep.subr.mxu0 0.0
        %576 = vmatpush1.msra.mxu0 0.0
        %577 = vmatprep.subr.mxu0 0.0
        %578 = vmatpush1.msra.mxu0 0.0
        %579 = vmatprep.subr.mxu0 0.0
        %580 = vmatpush1.msra.mxu0 0.0
        %581 = vmatprep.subr.mxu0 0.0
        %582 = vmatpush1.msra.mxu0 0.0
        %583 = vmatprep.subr.mxu0 0.0
        %584 = vmatpush1.msra.mxu0 0.0
        %585 = vmatprep.mubr.f32.mxu0 0.0
        %586 = vmatmul.mubr.f32.gmra.mrb[0].mxu0 %v519
        %v587 = vpop.f32.mrb[0].mxu0
        %v588 = vadd.f32 %v515, %v587
        %v589 = vpop.f32.mrb[0].mxu0
        %590 = vdwg.mxu0
        %v591 = vtanh.pop %v588
        %v592 = vld [vmem:[#allocation8] sm:$0xff]
        %v593 = vld [vmem:[#allocation8 + $0x8] sm:$0xff]
        %v594 = vld [vmem:[#allocation8 + $0x10] sm:$0xff]
        %v595 = vld [vmem:[#allocation8 + $0x18] sm:$0xff]
        %v596 = vld [vmem:[%s7] sm:$0x1]
        %v598 = vlaneseq
        %v599 = vshrl.u32 %v598, 7
        %v600 = vsub.s32 0, %v599
        %v601 = vrot.slane %v596, %v600
        %v604 = vsel %vm517, %v591, 0
        %606 = vmatprep.subr.mxu0 0.0
        %607 = vmatpush1.msra.mxu0 %v592
        %608 = vmatprep.subr.mxu0 0.0
        %609 = vmatpush1.msra.mxu0 %v593
        %610 = vmatprep.subr.mxu0 0.0
        %611 = vmatpush1.msra.mxu0 %v594
        %612 = vmatprep.subr.mxu0 0.0
        %613 = vmatpush1.msra.mxu0 %v595
        %614 = vmatprep.subr.mxu0 0.0
        %615 = vmatpush1.msra.mxu0 0.0
        %616 = vmatprep.subr.mxu0 0.0
        %617 = vmatpush1.msra.mxu0 0.0
        %618 = vmatprep.subr.mxu0 0.0
        %619 = vmatpush1.msra.mxu0 0.0
        %620 = vmatprep.subr.mxu0 0.0
        %621 = vmatpush1.msra.mxu0 0.0
        %622 = vmatprep.subr.mxu0 0.0
        %623 = vmatpush1.msra.mxu0 0.0
        %624 = vmatprep.subr.mxu0 0.0
        %625 = vmatpush1.msra.mxu0 0.0
        %626 = vmatprep.subr.mxu0 0.0
        %627 = vmatpush1.msra.mxu0 0.0
        %628 = vmatprep.subr.mxu0 0.0
        %629 = vmatpush1.msra.mxu0 0.0
        %630 = vmatprep.subr.mxu0 0.0
        %631 = vmatpush1.msra.mxu0 0.0
        %632 = vmatprep.subr.mxu0 0.0
        %633 = vmatpush1.msra.mxu0 0.0
        %634 = vmatprep.subr.mxu0 0.0
        %635 = vmatpush1.msra.mxu0 0.0
        %636 = vmatprep.subr.mxu0 0.0
        %637 = vmatpush1.msra.mxu0 0.0
        %638 = vmatprep.subr.mxu0 0.0
        %639 = vmatpush1.msra.mxu0 0.0
        %640 = vmatprep.subr.mxu0 0.0
        %641 = vmatpush1.msra.mxu0 0.0
        %642 = vmatprep.subr.mxu0 0.0
        %643 = vmatpush1.msra.mxu0 0.0
        %644 = vmatprep.subr.mxu0 0.0
        %645 = vmatpush1.msra.mxu0 0.0
        %646 = vmatprep.subr.mxu0 0.0
        %647 = vmatpush1.msra.mxu0 0.0
        %648 = vmatprep.subr.mxu0 0.0
        %649 = vmatpush1.msra.mxu0 0.0
        %650 = vmatprep.subr.mxu0 0.0
        %651 = vmatpush1.msra.mxu0 0.0
        %652 = vmatprep.subr.mxu0 0.0
        %653 = vmatpush1.msra.mxu0 0.0
        %654 = vmatprep.subr.mxu0 0.0
        %655 = vmatpush1.msra.mxu0 0.0
        %656 = vmatprep.subr.mxu0 0.0
        %657 = vmatpush1.msra.mxu0 0.0
        %658 = vmatprep.subr.mxu0 0.0
        %659 = vmatpush1.msra.mxu0 0.0
        %660 = vmatprep.subr.mxu0 0.0
        %661 = vmatpush1.msra.mxu0 0.0
        %662 = vmatprep.subr.mxu0 0.0
        %663 = vmatpush1.msra.mxu0 0.0
        %664 = vmatprep.subr.mxu0 0.0
        %665 = vmatpush1.msra.mxu0 0.0
        %666 = vmatprep.subr.mxu0 0.0
        %667 = vmatpush1.msra.mxu0 0.0
        %668 = vmatprep.subr.mxu0 0.0
        %669 = vmatpush1.msra.mxu0 0.0
        %670 = vmatprep.mubr.f32.mxu0 0.0
        %671 = vmatmul.mubr.f32.gmra.mrb[0].mxu0 %v604
        %v672 = vpop.f32.mrb[0].mxu0
        %v673 = vadd.f32 %v601, %v672
        %v674 = vpop.f32.mrb[0].mxu0
        %675 = vdwg.mxu0
        %v676 = vtanh.pop %v673
        %v677 = vmul.f32 %v676, 1.442695
        %v678 = vpow.pop %v677
        %v679 = vmul.f32 %v497, %v678
        %681 = vrot.lane.b32.xlu0 %v673, 112
        %v682 = vpop.permute.xlu0 %681
        %v684 = vadd.f32 %v679, %v682
        %v685 = vsel %vm504, %v676, 0.0
        %686 = vadd.xlane.f32.xlu0 %v685
        %v687 = vpop.xlane.xlu0 %686
        %v688 = vsub.f32 %v498, %v687
        %v689 = vsel %vm504, %v684, %v502
        %s690 = scalar_lea.vmem [#allocation7], 32
        %v691 = vld [vmem:[%s690] sm:$0xff]
        %v692 = vld [vmem:[%s690 + $0x8] sm:$0xff]
        %v693 = vld [vmem:[%s690 + $0x10] sm:$0xff]
        %v694 = vld [vmem:[%s690 + $0x18] sm:$0xff]
        %s695 = scalar_lea.vmem %s5, 1
        %v696 = vld [vmem:[%s695] sm:$0x1]
        %v698 = vlaneseq
        %v699 = vshrl.u32 %v698, 7
        %v700 = vsub.s32 0, %v699
        %v701 = vrot.slane %v696, %v700
        %v704 = vsel %vm517, %v689, 0
        %706 = vmatprep.subr.mxu0 0.0
        %707 = vmatpush1.msra.mxu0 %v691
        %708 = vmatprep.subr.mxu0 0.0
        %709 = vmatpush1.msra.mxu0 %v692
        %710 = vmatprep.subr.mxu0 0.0
        %711 = vmatpush1.msra.mxu0 %v693
        %712 = vmatprep.subr.mxu0 0.0
        %713 = vmatpush1.msra.mxu0 %v694
        %714 = vmatprep.subr.mxu0 0.0
        %715 = vmatpush1.msra.mxu0 0.0
        %716 = vmatprep.subr.mxu0 0.0
        %717 = vmatpush1.msra.mxu0 0.0
        %718 = vmatprep.subr.mxu0 0.0
        %719 = vmatpush1.msra.mxu0 0.0
        %720 = vmatprep.subr.mxu0 0.0
        %721 = vmatpush1.msra.mxu0 0.0
        %722 = vmatprep.subr.mxu0 0.0
        %723 = vmatpush1.msra.mxu0 0.0
        %724 = vmatprep.subr.mxu0 0.0
        %725 = vmatpush1.msra.mxu0 0.0
        %726 = vmatprep.subr.mxu0 0.0
        %727 = vmatpush1.msra.mxu0 0.0
        %728 = vmatprep.subr.mxu0 0.0
        %729 = vmatpush1.msra.mxu0 0.0
        %730 = vmatprep.subr.mxu0 0.0
        %731 = vmatpush1.msra.mxu0 0.0
        %732 = vmatprep.subr.mxu0 0.0
        %733 = vmatpush1.msra.mxu0 0.0
        %734 = vmatprep.subr.mxu0 0.0
        %735 = vmatpush1.msra.mxu0 0.0
        %736 = vmatprep.subr.mxu0 0.0
        %737 = vmatpush1.msra.mxu0 0.0
        %738 = vmatprep.subr.mxu0 0.0
        %739 = vmatpush1.msra.mxu0 0.0
        %740 = vmatprep.subr.mxu0 0.0
        %741 = vmatpush1.msra.mxu0 0.0
        %742 = vmatprep.subr.mxu0 0.0
        %743 = vmatpush1.msra.mxu0 0.0
        %744 = vmatprep.subr.mxu0 0.0
        %745 = vmatpush1.msra.mxu0 0.0
        %746 = vmatprep.subr.mxu0 0.0
        %747 = vmatpush1.msra.mxu0 0.0
        %748 = vmatprep.subr.mxu0 0.0
        %749 = vmatpush1.msra.mxu0 0.0
        %750 = vmatprep.subr.mxu0 0.0
        %751 = vmatpush1.msra.mxu0 0.0
        %752 = vmatprep.subr.mxu0 0.0
        %753 = vmatpush1.msra.mxu0 0.0
        %754 = vmatprep.subr.mxu0 0.0
        %755 = vmatpush1.msra.mxu0 0.0
        %756 = vmatprep.subr.mxu0 0.0
        %757 = vmatpush1.msra.mxu0 0.0
        %758 = vmatprep.subr.mxu0 0.0
        %759 = vmatpush1.msra.mxu0 0.0
        %760 = vmatprep.subr.mxu0 0.0
        %761 = vmatpush1.msra.mxu0 0.0
        %762 = vmatprep.subr.mxu0 0.0
        %763 = vmatpush1.msra.mxu0 0.0
        %764 = vmatprep.subr.mxu0 0.0
        %765 = vmatpush1.msra.mxu0 0.0
        %766 = vmatprep.subr.mxu0 0.0
        %767 = vmatpush1.msra.mxu0 0.0
        %768 = vmatprep.subr.mxu0 0.0
        %769 = vmatpush1.msra.mxu0 0.0
        %770 = vmatprep.mubr.f32.mxu0 0.0
        %771 = vmatmul.mubr.f32.gmra.mrb[0].mxu0 %v704
        %v772 = vpop.f32.mrb[0].mxu0
        %v773 = vadd.f32 %v701, %v772
        %v774 = vpop.f32.mrb[0].mxu0
        %775 = vdwg.mxu0
        %v776 = vtanh.pop %v773
        %s777 = scalar_lea.vmem [#allocation8], 32
        %v778 = vld [vmem:[%s777] sm:$0xff]
        %v779 = vld [vmem:[%s777 + $0x8] sm:$0xff]
        %v780 = vld [vmem:[%s777 + $0x10] sm:$0xff]
        %v781 = vld [vmem:[%s777 + $0x18] sm:$0xff]
        %s782 = scalar_lea.vmem %s7, 1
        %v783 = vld [vmem:[%s782] sm:$0x1]
        %v785 = vlaneseq
        %v786 = vshrl.u32 %v785, 7
        %v787 = vsub.s32 0, %v786
        %v788 = vrot.slane %v783, %v787
        %v791 = vsel %vm517, %v776, 0
        %793 = vmatprep.subr.mxu0 0.0
        %794 = vmatpush1.msra.mxu0 %v778
        %795 = vmatprep.subr.mxu0 0.0
        %796 = vmatpush1.msra.mxu0 %v779
        %797 = vmatprep.subr.mxu0 0.0
        %798 = vmatpush1.msra.mxu0 %v780
        %799 = vmatprep.subr.mxu0 0.0
        %800 = vmatpush1.msra.mxu0 %v781
        %801 = vmatprep.subr.mxu0 0.0
        %802 = vmatpush1.msra.mxu0 0.0
        %803 = vmatprep.subr.mxu0 0.0
        %804 = vmatpush1.msra.mxu0 0.0
        %805 = vmatprep.subr.mxu0 0.0
        %806 = vmatpush1.msra.mxu0 0.0
        %807 = vmatprep.subr.mxu0 0.0
        %808 = vmatpush1.msra.mxu0 0.0
        %809 = vmatprep.subr.mxu0 0.0
        %810 = vmatpush1.msra.mxu0 0.0
        %811 = vmatprep.subr.mxu0 0.0
        %812 = vmatpush1.msra.mxu0 0.0
        %813 = vmatprep.subr.mxu0 0.0
        %814 = vmatpush1.msra.mxu0 0.0
        %815 = vmatprep.subr.mxu0 0.0
        %816 = vmatpush1.msra.mxu0 0.0
        %817 = vmatprep.subr.mxu0 0.0
        %818 = vmatpush1.msra.mxu0 0.0
        %819 = vmatprep.subr.mxu0 0.0
        %820 = vmatpush1.msra.mxu0 0.0
        %821 = vmatprep.subr.mxu0 0.0
        %822 = vmatpush1.msra.mxu0 0.0
        %823 = vmatprep.subr.mxu0 0.0
        %824 = vmatpush1.msra.mxu0 0.0
        %825 = vmatprep.subr.mxu0 0.0
        %826 = vmatpush1.msra.mxu0 0.0
        %827 = vmatprep.subr.mxu0 0.0
        %828 = vmatpush1.msra.mxu0 0.0
        %829 = vmatprep.subr.mxu0 0.0
        %830 = vmatpush1.msra.mxu0 0.0
        %831 = vmatprep.subr.mxu0 0.0
        %832 = vmatpush1.msra.mxu0 0.0
        %833 = vmatprep.subr.mxu0 0.0
        %834 = vmatpush1.msra.mxu0 0.0
        %835 = vmatprep.subr.mxu0 0.0
        %836 = vmatpush1.msra.mxu0 0.0
        %837 = vmatprep.subr.mxu0 0.0
        %838 = vmatpush1.msra.mxu0 0.0
        %839 = vmatprep.subr.mxu0 0.0
        %840 = vmatpush1.msra.mxu0 0.0
        %841 = vmatprep.subr.mxu0 0.0
        %842 = vmatpush1.msra.mxu0 0.0
        %843 = vmatprep.subr.mxu0 0.0
        %844 = vmatpush1.msra.mxu0 0.0
        %845 = vmatprep.subr.mxu0 0.0
        %846 = vmatpush1.msra.mxu0 0.0
        %847 = vmatprep.subr.mxu0 0.0
        %848 = vmatpush1.msra.mxu0 0.0
        %849 = vmatprep.subr.mxu0 0.0
        %850 = vmatpush1.msra.mxu0 0.0
        %851 = vmatprep.subr.mxu0 0.0
        %852 = vmatpush1.msra.mxu0 0.0
        %853 = vmatprep.subr.mxu0 0.0
        %854 = vmatpush1.msra.mxu0 0.0
        %855 = vmatprep.subr.mxu0 0.0
        %856 = vmatpush1.msra.mxu0 0.0
        %857 = vmatprep.mubr.f32.mxu0 0.0
        %858 = vmatmul.mubr.f32.gmra.mrb[0].mxu0 %v791
        %v859 = vpop.f32.mrb[0].mxu0
        %v860 = vadd.f32 %v788, %v859
        %v861 = vpop.f32.mrb[0].mxu0
        %862 = vdwg.mxu0
        %v863 = vtanh.pop %v860
        %v864 = vmul.f32 %v863, 1.442695
        %v865 = vpow.pop %v864
        %v866 = vmul.f32 %v496, %v865
        %868 = vrot.lane.b32.xlu0 %v860, 112
        %v869 = vpop.permute.xlu0 %868
        %v871 = vadd.f32 %v866, %v869
        %v872 = vsel %vm504, %v863, 0.0
        %873 = vadd.xlane.f32.xlu0 %v872
        %v874 = vpop.xlane.xlu0 %873
        %v875 = vsub.f32 %v688, %v874
        %v876 = vsel %vm504, %v871, %v502
        %s877 = scalar_lea.vmem [#allocation7], 64
        %v878 = vld [vmem:[%s877] sm:$0xff]
        %v879 = vld [vmem:[%s877 + $0x8] sm:$0xff]
        %v880 = vld [vmem:[%s877 + $0x10] sm:$0xff]
        %v881 = vld [vmem:[%s877 + $0x18] sm:$0xff]
        %s882 = scalar_lea.vmem %s5, 2
        %v883 = vld [vmem:[%s882] sm:$0x1]
        %v885 = vlaneseq
        %v886 = vshrl.u32 %v885, 7
        %v887 = vsub.s32 0, %v886
        %v888 = vrot.slane %v883, %v887
        %v891 = vsel %vm517, %v876, 0
        %893 = vmatprep.subr.mxu0 0.0
        %894 = vmatpush1.msra.mxu0 %v878
        %895 = vmatprep.subr.mxu0 0.0
        %896 = vmatpush1.msra.mxu0 %v879
        %897 = vmatprep.subr.mxu0 0.0
        %898 = vmatpush1.msra.mxu0 %v880
        %899 = vmatprep.subr.mxu0 0.0
        %900 = vmatpush1.msra.mxu0 %v881
        %901 = vmatprep.subr.mxu0 0.0
        %902 = vmatpush1.msra.mxu0 0.0
        %903 = vmatprep.subr.mxu0 0.0
        %904 = vmatpush1.msra.mxu0 0.0
        %905 = vmatprep.subr.mxu0 0.0
        %906 = vmatpush1.msra.mxu0 0.0
        %907 = vmatprep.subr.mxu0 0.0
        %908 = vmatpush1.msra.mxu0 0.0
        %909 = vmatprep.subr.mxu0 0.0
        %910 = vmatpush1.msra.mxu0 0.0
        %911 = vmatprep.subr.mxu0 0.0
        %912 = vmatpush1.msra.mxu0 0.0
        %913 = vmatprep.subr.mxu0 0.0
        %914 = vmatpush1.msra.mxu0 0.0
        %915 = vmatprep.subr.mxu0 0.0
        %916 = vmatpush1.msra.mxu0 0.0
        %917 = vmatprep.subr.mxu0 0.0
        %918 = vmatpush1.msra.mxu0 0.0
        %919 = vmatprep.subr.mxu0 0.0
        %920 = vmatpush1.msra.mxu0 0.0
        %921 = vmatprep.subr.mxu0 0.0
        %922 = vmatpush1.msra.mxu0 0.0
        %923 = vmatprep.subr.mxu0 0.0
        %924 = vmatpush1.msra.mxu0 0.0
        %925 = vmatprep.subr.mxu0 0.0
        %926 = vmatpush1.msra.mxu0 0.0
        %927 = vmatprep.subr.mxu0 0.0
        %928 = vmatpush1.msra.mxu0 0.0
        %929 = vmatprep.subr.mxu0 0.0
        %930 = vmatpush1.msra.mxu0 0.0
        %931 = vmatprep.subr.mxu0 0.0
        %932 = vmatpush1.msra.mxu0 0.0
        %933 = vmatprep.subr.mxu0 0.0
        %934 = vmatpush1.msra.mxu0 0.0
        %935 = vmatprep.subr.mxu0 0.0
        %936 = vmatpush1.msra.mxu0 0.0
        %937 = vmatprep.subr.mxu0 0.0
        %938 = vmatpush1.msra.mxu0 0.0
        %939 = vmatprep.subr.mxu0 0.0
        %940 = vmatpush1.msra.mxu0 0.0
        %941 = vmatprep.subr.mxu0 0.0
        %942 = vmatpush1.msra.mxu0 0.0
        %943 = vmatprep.subr.mxu0 0.0
        %944 = vmatpush1.msra.mxu0 0.0
        %945 = vmatprep.subr.mxu0 0.0
        %946 = vmatpush1.msra.mxu0 0.0
        %947 = vmatprep.subr.mxu0 0.0
        %948 = vmatpush1.msra.mxu0 0.0
        %949 = vmatprep.subr.mxu0 0.0
        %950 = vmatpush1.msra.mxu0 0.0
        %951 = vmatprep.subr.mxu0 0.0
        %952 = vmatpush1.msra.mxu0 0.0
        %953 = vmatprep.subr.mxu0 0.0
        %954 = vmatpush1.msra.mxu0 0.0
        %955 = vmatprep.subr.mxu0 0.0
        %956 = vmatpush1.msra.mxu0 0.0
        %957 = vmatprep.mubr.f32.mxu0 0.0
        %958 = vmatmul.mubr.f32.gmra.mrb[0].mxu0 %v891
        %v959 = vpop.f32.mrb[0].mxu0
        %v960 = vadd.f32 %v888, %v959
        %v961 = vpop.f32.mrb[0].mxu0
        %962 = vdwg.mxu0
        %v963 = vtanh.pop %v960
        %s964 = scalar_lea.vmem [#allocation8], 64
        %v965 = vld [vmem:[%s964] sm:$0xff]
        %v966 = vld [vmem:[%s964 + $0x8] sm:$0xff]
        %v967 = vld [vmem:[%s964 + $0x10] sm:$0xff]
        %v968 = vld [vmem:[%s964 + $0x18] sm:$0xff]
        %s969 = scalar_lea.vmem %s7, 2
        %v970 = vld [vmem:[%s969] sm:$0x1]
        %v972 = vlaneseq
        %v973 = vshrl.u32 %v972, 7
        %v974 = vsub.s32 0, %v973
        %v975 = vrot.slane %v970, %v974
        %v978 = vsel %vm517, %v963, 0
        %980 = vmatprep.subr.mxu0 0.0
        %981 = vmatpush1.msra.mxu0 %v965
        %982 = vmatprep.subr.mxu0 0.0
        %983 = vmatpush1.msra.mxu0 %v966
        %984 = vmatprep.subr.mxu0 0.0
        %985 = vmatpush1.msra.mxu0 %v967
        %986 = vmatprep.subr.mxu0 0.0
        %987 = vmatpush1.msra.mxu0 %v968
        %988 = vmatprep.subr.mxu0 0.0
        %989 = vmatpush1.msra.mxu0 0.0
        %990 = vmatprep.subr.mxu0 0.0
        %991 = vmatpush1.msra.mxu0 0.0
        %992 = vmatprep.subr.mxu0 0.0
        %993 = vmatpush1.msra.mxu0 0.0
        %994 = vmatprep.subr.mxu0 0.0
        %995 = vmatpush1.msra.mxu0 0.0
        %996 = vmatprep.subr.mxu0 0.0
        %997 = vmatpush1.msra.mxu0 0.0
        %998 = vmatprep.subr.mxu0 0.0
        %999 = vmatpush1.msra.mxu0 0.0
        %1000 = vmatprep.subr.mxu0 0.0
        %1001 = vmatpush1.msra.mxu0 0.0
        %1002 = vmatprep.subr.mxu0 0.0
        %1003 = vmatpush1.msra.mxu0 0.0
        %1004 = vmatprep.subr.mxu0 0.0
        %1005 = vmatpush1.msra.mxu0 0.0
        %1006 = vmatprep.subr.mxu0 0.0
        %1007 = vmatpush1.msra.mxu0 0.0
        %1008 = vmatprep.subr.mxu0 0.0
        %1009 = vmatpush1.msra.mxu0 0.0
        %1010 = vmatprep.subr.mxu0 0.0
        %1011 = vmatpush1.msra.mxu0 0.0
        %1012 = vmatprep.subr.mxu0 0.0
        %1013 = vmatpush1.msra.mxu0 0.0
        %1014 = vmatprep.subr.mxu0 0.0
        %1015 = vmatpush1.msra.mxu0 0.0
        %1016 = vmatprep.subr.mxu0 0.0
        %1017 = vmatpush1.msra.mxu0 0.0
        %1018 = vmatprep.subr.mxu0 0.0
        %1019 = vmatpush1.msra.mxu0 0.0
        %1020 = vmatprep.subr.mxu0 0.0
        %1021 = vmatpush1.msra.mxu0 0.0
        %1022 = vmatprep.subr.mxu0 0.0
        %1023 = vmatpush1.msra.mxu0 0.0
        %1024 = vmatprep.subr.mxu0 0.0
        %1025 = vmatpush1.msra.mxu0 0.0
        %1026 = vmatprep.subr.mxu0 0.0
        %1027 = vmatpush1.msra.mxu0 0.0
        %1028 = vmatprep.subr.mxu0 0.0
        %1029 = vmatpush1.msra.mxu0 0.0
        %1030 = vmatprep.subr.mxu0 0.0
        %1031 = vmatpush1.msra.mxu0 0.0
        %1032 = vmatprep.subr.mxu0 0.0
        %1033 = vmatpush1.msra.mxu0 0.0
        %1034 = vmatprep.subr.mxu0 0.0
        %1035 = vmatpush1.msra.mxu0 0.0
        %1036 = vmatprep.subr.mxu0 0.0
        %1037 = vmatpush1.msra.mxu0 0.0
        %1038 = vmatprep.subr.mxu0 0.0
        %1039 = vmatpush1.msra.mxu0 0.0
        %1040 = vmatprep.subr.mxu0 0.0
        %1041 = vmatpush1.msra.mxu0 0.0
        %1042 = vmatprep.subr.mxu0 0.0
        %1043 = vmatpush1.msra.mxu0 0.0
        %1044 = vmatprep.mubr.f32.mxu0 0.0
        %1045 = vmatmul.mubr.f32.gmra.mrb[0].mxu0 %v978
        %v1046 = vpop.f32.mrb[0].mxu0
        %v1047 = vadd.f32 %v975, %v1046
        %v1048 = vpop.f32.mrb[0].mxu0
        %1049 = vdwg.mxu0
        %v1050 = vtanh.pop %v1047
        %v1051 = vmul.f32 %v1050, 1.442695
        %v1052 = vpow.pop %v1051
        %v1053 = vmul.f32 %v684, %v1052
        %1055 = vrot.lane.b32.xlu0 %v1047, 112
        %v1056 = vpop.permute.xlu0 %1055
        %v1058 = vadd.f32 %v1053, %v1056
        %v1059 = vsel %vm504, %v1050, 0.0
        %1060 = vadd.xlane.f32.xlu0 %v1059
        %v1061 = vpop.xlane.xlu0 %1060
        %v1062 = vsub.f32 %v875, %v1061
        %v1063 = vsel %vm504, %v1058, %v502
        %s1064 = scalar_lea.vmem [#allocation7], 96
        %v1065 = vld [vmem:[%s1064] sm:$0xff]
        %v1066 = vld [vmem:[%s1064 + $0x8] sm:$0xff]
        %v1067 = vld [vmem:[%s1064 + $0x10] sm:$0xff]
        %v1068 = vld [vmem:[%s1064 + $0x18] sm:$0xff]
        %s1069 = scalar_lea.vmem %s5, 3
        %v1070 = vld [vmem:[%s1069] sm:$0x1]
        %v1072 = vlaneseq
        %v1073 = vshrl.u32 %v1072, 7
        %v1074 = vsub.s32 0, %v1073
        %v1075 = vrot.slane %v1070, %v1074
        %v1078 = vsel %vm517, %v1063, 0
        %1080 = vmatprep.subr.mxu0 0.0
        %1081 = vmatpush1.msra.mxu0 %v1065
        %1082 = vmatprep.subr.mxu0 0.0
        %1083 = vmatpush1.msra.mxu0 %v1066
        %1084 = vmatprep.subr.mxu0 0.0
        %1085 = vmatpush1.msra.mxu0 %v1067
        %1086 = vmatprep.subr.mxu0 0.0
        %1087 = vmatpush1.msra.mxu0 %v1068
        %1088 = vmatprep.subr.mxu0 0.0
        %1089 = vmatpush1.msra.mxu0 0.0
        %1090 = vmatprep.subr.mxu0 0.0
        %1091 = vmatpush1.msra.mxu0 0.0
        %1092 = vmatprep.subr.mxu0 0.0
        %1093 = vmatpush1.msra.mxu0 0.0
        %1094 = vmatprep.subr.mxu0 0.0
        %1095 = vmatpush1.msra.mxu0 0.0
        %1096 = vmatprep.subr.mxu0 0.0
        %1097 = vmatpush1.msra.mxu0 0.0
        %1098 = vmatprep.subr.mxu0 0.0
        %1099 = vmatpush1.msra.mxu0 0.0
        %1100 = vmatprep.subr.mxu0 0.0
        %1101 = vmatpush1.msra.mxu0 0.0
        %1102 = vmatprep.subr.mxu0 0.0
        %1103 = vmatpush1.msra.mxu0 0.0
        %1104 = vmatprep.subr.mxu0 0.0
        %1105 = vmatpush1.msra.mxu0 0.0
        %1106 = vmatprep.subr.mxu0 0.0
        %1107 = vmatpush1.msra.mxu0 0.0
        %1108 = vmatprep.subr.mxu0 0.0
        %1109 = vmatpush1.msra.mxu0 0.0
        %1110 = vmatprep.subr.mxu0 0.0
        %1111 = vmatpush1.msra.mxu0 0.0
        %1112 = vmatprep.subr.mxu0 0.0
        %1113 = vmatpush1.msra.mxu0 0.0
        %1114 = vmatprep.subr.mxu0 0.0
        %1115 = vmatpush1.msra.mxu0 0.0
        %1116 = vmatprep.subr.mxu0 0.0
        %1117 = vmatpush1.msra.mxu0 0.0
        %1118 = vmatprep.subr.mxu0 0.0
        %1119 = vmatpush1.msra.mxu0 0.0
        %1120 = vmatprep.subr.mxu0 0.0
        %1121 = vmatpush1.msra.mxu0 0.0
        %1122 = vmatprep.subr.mxu0 0.0
        %1123 = vmatpush1.msra.mxu0 0.0
        %1124 = vmatprep.subr.mxu0 0.0
        %1125 = vmatpush1.msra.mxu0 0.0
        %1126 = vmatprep.subr.mxu0 0.0
        %1127 = vmatpush1.msra.mxu0 0.0
        %1128 = vmatprep.subr.mxu0 0.0
        %1129 = vmatpush1.msra.mxu0 0.0
        %1130 = vmatprep.subr.mxu0 0.0
        %1131 = vmatpush1.msra.mxu0 0.0
        %1132 = vmatprep.subr.mxu0 0.0
        %1133 = vmatpush1.msra.mxu0 0.0
        %1134 = vmatprep.subr.mxu0 0.0
        %1135 = vmatpush1.msra.mxu0 0.0
        %1136 = vmatprep.subr.mxu0 0.0
        %1137 = vmatpush1.msra.mxu0 0.0
        %1138 = vmatprep.subr.mxu0 0.0
        %1139 = vmatpush1.msra.mxu0 0.0
        %1140 = vmatprep.subr.mxu0 0.0
        %1141 = vmatpush1.msra.mxu0 0.0
        %1142 = vmatprep.subr.mxu0 0.0
        %1143 = vmatpush1.msra.mxu0 0.0
        %1144 = vmatprep.mubr.f32.mxu0 0.0
        %1145 = vmatmul.mubr.f32.gmra.mrb[0].mxu0 %v1078
        %v1146 = vpop.f32.mrb[0].mxu0
        %v1147 = vadd.f32 %v1075, %v1146
        %v1148 = vpop.f32.mrb[0].mxu0
        %1149 = vdwg.mxu0
        %v1150 = vtanh.pop %v1147
        %s1151 = scalar_lea.vmem [#allocation8], 96
        %v1152 = vld [vmem:[%s1151] sm:$0xff]
        %v1153 = vld [vmem:[%s1151 + $0x8] sm:$0xff]
        %v1154 = vld [vmem:[%s1151 + $0x10] sm:$0xff]
        %v1155 = vld [vmem:[%s1151 + $0x18] sm:$0xff]
        %s1156 = scalar_lea.vmem %s7, 3
        %v1157 = vld [vmem:[%s1156] sm:$0x1]
        %v1159 = vlaneseq
        %v1160 = vshrl.u32 %v1159, 7
        %v1161 = vsub.s32 0, %v1160
        %v1162 = vrot.slane %v1157, %v1161
        %v1165 = vsel %vm517, %v1150, 0
        %1167 = vmatprep.subr.mxu0 0.0
        %1168 = vmatpush1.msra.mxu0 %v1152
        %1169 = vmatprep.subr.mxu0 0.0
        %1170 = vmatpush1.msra.mxu0 %v1153
        %1171 = vmatprep.subr.mxu0 0.0
        %1172 = vmatpush1.msra.mxu0 %v1154
        %1173 = vmatprep.subr.mxu0 0.0
        %1174 = vmatpush1.msra.mxu0 %v1155
        %1175 = vmatprep.subr.mxu0 0.0
        %1176 = vmatpush1.msra.mxu0 0.0
        %1177 = vmatprep.subr.mxu0 0.0
        %1178 = vmatpush1.msra.mxu0 0.0
        %1179 = vmatprep.subr.mxu0 0.0
        %1180 = vmatpush1.msra.mxu0 0.0
        %1181 = vmatprep.subr.mxu0 0.0
        %1182 = vmatpush1.msra.mxu0 0.0
        %1183 = vmatprep.subr.mxu0 0.0
        %1184 = vmatpush1.msra.mxu0 0.0
        %1185 = vmatprep.subr.mxu0 0.0
        %1186 = vmatpush1.msra.mxu0 0.0
        %1187 = vmatprep.subr.mxu0 0.0
        %1188 = vmatpush1.msra.mxu0 0.0
        %1189 = vmatprep.subr.mxu0 0.0
        %1190 = vmatpush1.msra.mxu0 0.0
        %1191 = vmatprep.subr.mxu0 0.0
        %1192 = vmatpush1.msra.mxu0 0.0
        %1193 = vmatprep.subr.mxu0 0.0
        %1194 = vmatpush1.msra.mxu0 0.0
        %1195 = vmatprep.subr.mxu0 0.0
        %1196 = vmatpush1.msra.mxu0 0.0
        %1197 = vmatprep.subr.mxu0 0.0
        %1198 = vmatpush1.msra.mxu0 0.0
        %1199 = vmatprep.subr.mxu0 0.0
        %1200 = vmatpush1.msra.mxu0 0.0
        %1201 = vmatprep.subr.mxu0 0.0
        %1202 = vmatpush1.msra.mxu0 0.0
        %1203 = vmatprep.subr.mxu0 0.0
        %1204 = vmatpush1.msra.mxu0 0.0
        %1205 = vmatprep.subr.mxu0 0.0
        %1206 = vmatpush1.msra.mxu0 0.0
        %1207 = vmatprep.subr.mxu0 0.0
        %1208 = vmatpush1.msra.mxu0 0.0
        %1209 = vmatprep.subr.mxu0 0.0
        %1210 = vmatpush1.msra.mxu0 0.0
        %1211 = vmatprep.subr.mxu0 0.0
        %1212 = vmatpush1.msra.mxu0 0.0
        %1213 = vmatprep.subr.mxu0 0.0
        %1214 = vmatpush1.msra.mxu0 0.0
        %1215 = vmatprep.subr.mxu0 0.0
        %1216 = vmatpush1.msra.mxu0 0.0
        %1217 = vmatprep.subr.mxu0 0.0
        %1218 = vmatpush1.msra.mxu0 0.0
        %1219 = vmatprep.subr.mxu0 0.0
        %1220 = vmatpush1.msra.mxu0 0.0
        %1221 = vmatprep.subr.mxu0 0.0
        %1222 = vmatpush1.msra.mxu0 0.0
        %1223 = vmatprep.subr.mxu0 0.0
        %1224 = vmatpush1.msra.mxu0 0.0
        %1225 = vmatprep.subr.mxu0 0.0
        %1226 = vmatpush1.msra.mxu0 0.0
        %1227 = vmatprep.subr.mxu0 0.0
        %1228 = vmatpush1.msra.mxu0 0.0
        %1229 = vmatprep.subr.mxu0 0.0
        %1230 = vmatpush1.msra.mxu0 0.0
        %1231 = vmatprep.mubr.f32.mxu0 0.0
        %1232 = vmatmul.mubr.f32.gmra.mrb[0].mxu0 %v1165
        %v1233 = vpop.f32.mrb[0].mxu0
        %v1234 = vadd.f32 %v1162, %v1233
        %v1235 = vpop.f32.mrb[0].mxu0
        %1236 = vdwg.mxu0
        %v1237 = vtanh.pop %v1234
        %v1238 = vmul.f32 %v1237, 1.442695
        %v1239 = vpow.pop %v1238
        %v1240 = vmul.f32 %v871, %v1239
        %1242 = vrot.lane.b32.xlu0 %v1234, 112
        %v1243 = vpop.permute.xlu0 %1242
        %v1245 = vadd.f32 %v1240, %v1243
        %v1246 = vsel %vm504, %v1237, 0.0
        %1247 = vadd.xlane.f32.xlu0 %v1246
        %v1248 = vpop.xlane.xlu0 %1247
        %v1249 = vsub.f32 %v1062, %v1248
        %1250 = vst.msk [vmem:[%s470] sm:$0xff] %vm504, %v1245
        %1251 = vst.msk [vmem:[%s477] sm:$0xff] %vm504, %v1058
        %vm1252 = vcmask 7168
        %1253 = vst.msk [vmem:[%s495] sm:$0xff] %vm1252, %v1249
        %s1254 = sand.u32 %s231, 1
        %s1255 = scalar_lea.sflag [#allocation4], %s1254
        %s1256 = sand.u32 %s231, 1
        %s1257 = smul.addr %s1256, 8
        %s1258 = scalar_lea.vmem [#allocation10], %s1257
        %s1259 = sand.u32 %s257, 1
        %s1260 = scalar_lea.sflag [#allocation12], %s1259
        %s1261 = sand.u32 %s257, 1
        %s1262 = smul.addr %s1261, 8
        %s1263 = scalar_lea.vmem [#allocation11], %s1262
        %p1264 = scmp.lt.s32.totalorder %s35, 1
        %s1265 = scalar_select %p1264, %s35, 1
        %s1266 = smul.addr %s1265, 8
        %s1267 = scalar_lea.vmem %s10, %s1266
        // Predicated region
        $region69: #{tpu_custom_call.1} parent=51 // pred_check
          %p1268 = pneg %p241
        $region70: #{tpu_custom_call.1} parent=51 // pred_check_branch
          %1270 = sbr.rel (%p1268) target = $region72
        $region71: #{tpu_custom_call.1} parent=51 // pred_region
          %s1272 = ssub.s32 128, 128
          %1273 = vsyncadd %s1255, %s1272
          %s1274 = smul.addr %s35, 128
          %s1275 = scalar_lea.hbm %s8, %s1274
          %s1277 = sshll.u32 %s1258, 4
          %s1278 = int_to_ptr.vmem [resolvable:$true] %s1277
          %1280 = dma.vmem_to_hbm [thread:$0]  %s1278, 128, %s1275, %s1255
        $region72: #{tpu_custom_call.1} parent=51 // pred_fallthru
          _
        // Predicated region
        $region73: #{tpu_custom_call.1} parent=51 // pred_check
          %p1281 = pneg %p267
        $region74: #{tpu_custom_call.1} parent=51 // pred_check_branch
          %1283 = sbr.rel (%p1281) target = $region76
        $region75: #{tpu_custom_call.1} parent=51 // pred_region
          %s1285 = ssub.s32 128, 128
          %1286 = vsyncadd %s1260, %s1285
          %s1287 = smul.addr %s35, 128
          %s1288 = scalar_lea.hbm %s9, %s1287
          %s1290 = sshll.u32 %s1263, 4
          %s1291 = int_to_ptr.vmem [resolvable:$true] %s1290
          %1293 = dma.vmem_to_hbm [thread:$0]  %s1291, 128, %s1288, %s1260
        $region76: #{tpu_custom_call.1} parent=51 // pred_fallthru
          _
        // Predicated region
        $region77: #{tpu_custom_call.1} parent=51 // pred_check
          %p1294 = pneg %p293
        $region78: #{tpu_custom_call.1} parent=51 // pred_check_branch
          %1296 = sbr.rel (%p1294) target = $region80
        $region79: #{tpu_custom_call.1} parent=51 // pred_region
          _
        $region80: #{tpu_custom_call.1} parent=51 // pred_fallthru
          _
      $region52: #{tpu_custom_call.1} parent=5 // pred_fallthru
        _
      %p1297 = scmp.le.s32.totalorder 2, %s30
      // Predicated region
      $region81: #{tpu_custom_call.1} parent=5 // pred_check
        %p1298 = pneg %p1297
      $region82: #{tpu_custom_call.1} parent=5 // pred_check_branch
        %1300 = sbr.rel (%p1298) target = $region84
      $region83: #{tpu_custom_call.1} parent=5 // pred_region
        %s1301 = ssub.s32 %s30, 2
        // Predicated region
        $region85: #{tpu_custom_call.1} parent=83 // pred_check
          %p1302 = pneg %p247
        $region86: #{tpu_custom_call.1} parent=83 // pred_check_branch
          %1304 = sbr.rel (%p1302) target = $region88
        $region87: #{tpu_custom_call.1} parent=83 // pred_region
          %s1305 = sand.u32 %s232, 1
          %s1306 = scalar_lea.sflag [#allocation4], %s1305
          %s1307 = sand.u32 %s232, 1
          %s1308 = smul.addr %s1307, 8
          %s1309 = scalar_lea.vmem [#allocation10], %s1308
          %1310 = dma.done %s1306, 128
        $region88: #{tpu_custom_call.1} parent=83 // pred_fallthru
          _
        // Predicated region
        $region89: #{tpu_custom_call.1} parent=83 // pred_check
          %p1311 = pneg %p273
        $region90: #{tpu_custom_call.1} parent=83 // pred_check_branch
          %1313 = sbr.rel (%p1311) target = $region92
        $region91: #{tpu_custom_call.1} parent=83 // pred_region
          %s1314 = sand.u32 %s258, 1
          %s1315 = scalar_lea.sflag [#allocation12], %s1314
          %s1316 = sand.u32 %s258, 1
          %s1317 = smul.addr %s1316, 8
          %s1318 = scalar_lea.vmem [#allocation11], %s1317
          %1319 = dma.done %s1315, 128
        $region92: #{tpu_custom_call.1} parent=83 // pred_fallthru
          _
        // Predicated region
        $region93: #{tpu_custom_call.1} parent=83 // pred_check
          %p1320 = pneg %p299
        $region94: #{tpu_custom_call.1} parent=83 // pred_check_branch
          %1322 = sbr.rel (%p1320) target = $region96
        $region95: #{tpu_custom_call.1} parent=83 // pred_region
          %p1323 = scmp.lt.s32.totalorder %s36, 1
          %s1324 = scalar_select %p1323, %s36, 1
          %s1325 = smul.addr %s1324, 8
          %s1326 = scalar_lea.vmem %s10, %s1325
        $region96: #{tpu_custom_call.1} parent=83 // pred_fallthru
          _
      $region84: #{tpu_custom_call.1} parent=5 // pred_fallthru
        _
    $region6: #{tpu_custom_call.1} parent=1 // loop_footer
      %s34 = sadd.s32 1, %s30
    $region7: #{tpu_custom_call.1} parent=1 // loop_footer_branch
      %29 = sbr.rel target = $region3
    $region8: #{tpu_custom_call.1} parent=1 // loop_exit
      _
    %1327 = vsyncpa [#allocation3], 1
    %s1328 = scalar_lea.sflag [#allocation3], 1
    %1329 = vsyncpa %s1328, 1
    %1330 = vsyncpa [#allocation6], 1
    %s1331 = scalar_lea.sflag [#allocation6], 1
    %1332 = vsyncpa %s1331, 1
    %1333 = vsyncpa [#allocation9], 1
    %1334 = vsyncpa [#allocation4], 1
    %s1335 = scalar_lea.sflag [#allocation4], 1
    %1336 = vsyncpa %s1335, 1
    %1337 = vsyncpa [#allocation12], 1
    %s1338 = scalar_lea.sflag [#allocation12], 1
    %1339 = vsyncpa %s1338, 1

</llo_original>
